<compile_context>
chip_gen: v5e
topology: v5e:2x2
jax: 0.10.0
libtpu: 0.0.40
codegen_flags: <defaults>
</compile_context>

<pallas_src>
import functools

import jax
import jax.numpy as jnp
from jax.experimental import pallas as pl
from jax.experimental.pallas import tpu as pltpu

LN_EPS = 1e-6
NEG_INF = -1e9


# ----------------------------------------------------------------------------- kernel

def _layer_norm(x, gamma, beta):
    mu = jnp.mean(x, axis=-1, keepdims=True)
    var = jnp.mean((x - mu) ** 2, axis=-1, keepdims=True)
    return (x - mu) * jax.lax.rsqrt(var + LN_EPS) * gamma + beta


def _fused_encoder_kernel(emb_ref, pos_ref, topg_ref, topb_ref, mask_ref,
                          wq_ref, wk_ref, wv_ref, wo_ref,
                          w1_ref, b1_ref, w2_ref, b2_ref,
                          ln1g_ref, ln1b_ref, ln2g_ref, ln2b_ref,
                          out_ref, x_scratch, *, bb, n_head, d_k, d_v, scale):
    """One (batch-block, layer) grid step: prep at layer 0, then one full EncoderLayer.

    x_scratch (BB*L, D) carries the activation across the 'arbitrary' layer axis.
    """
    layer = pl.program_id(1)
    last = pl.num_programs(1) - 1
    L = pos_ref.shape[0]

    # ---- prep (layer 0 only): scale embedding + positional encoding + top LayerNorm
    @pl.when(layer == 0)
    def _prep():
        rows = jnp.concatenate([emb_ref[b] for b in range(bb)], axis=0) * scale  # (BB*L, D)
        pos = jnp.concatenate([pos_ref[...] for _ in range(bb)], axis=0)         # (BB*L, D)
        x_scratch[...] = _layer_norm(rows + pos, topg_ref[...], topb_ref[...])

    x = x_scratch[...]                                                   # (BB*L, D) f32

    # ---- multi-head self attention (post-norm residual) ---------------------------
    residual = x
    xb = x.astype(wq_ref.dtype)                                          # bf16 once for the MXU

    # Head-fused projections: one wide matmul per Q/K/V (N = n_head*d_k / n_head*d_v).
    q = jnp.dot(xb, wq_ref[0], preferred_element_type=jnp.float32)       # (BB*L, H*d_k); 1/sqrt(d_k) folded in
    k = jnp.dot(xb, wk_ref[0], preferred_element_type=jnp.float32)       # (BB*L, H*d_k)
    v = jnp.dot(xb, wv_ref[0], preferred_element_type=jnp.float32).astype(wo_ref.dtype)  # bf16 once for PV

    ctx_rows = []
    for b in range(bb):                                                  # static unroll (BB, n_head small)
        # Additive key-padding bias: built & broadcast ONCE per sequence, reused by every head.
        bias = jnp.where(mask_ref[b] == 0, NEG_INF, 0.0).astype(jnp.float32)     # (1, L)
        bias = jnp.broadcast_to(bias, (L, L))
        heads = []
        for h in range(n_head):
            qh = q[b * L:(b + 1) * L, h * d_k:(h + 1) * d_k]             # (L, d_k) static slices
            kh = k[b * L:(b + 1) * L, h * d_k:(h + 1) * d_k]
            vh = v[b * L:(b + 1) * L, h * d_v:(h + 1) * d_v]
            s = jax.lax.dot_general(qh, kh, (((1,), (1,)), ((), ())),
                                    preferred_element_type=jnp.float32) + bias   # (L, L)
            m = jnp.max(s, axis=-1, keepdims=True)
            e = jnp.exp(s - m)
            p = e * pl.reciprocal(jnp.sum(e, axis=-1, keepdims=True), approx=True)
            heads.append(jnp.dot(p.astype(vh.dtype), vh,
                                 preferred_element_type=jnp.float32))    # (L, d_v)
        ctx_rows.append(jnp.concatenate(heads, axis=-1))                 # (L, H*d_v) lane concat
    ctx = jnp.concatenate(ctx_rows, axis=0)                              # (BB*L, H*d_v)

    # Single wide output projection (K = n_head*d_v) — no per-head accumulates.
    attn_out = jnp.dot(ctx.astype(wo_ref.dtype), wo_ref[0],
                       preferred_element_type=jnp.float32)               # (BB*L, D)
    x = _layer_norm(attn_out + residual, ln1g_ref[0], ln1b_ref[0])       # dropout = identity (eval)

    # ---- position-wise feed-forward (post-norm residual) --------------------------
    residual = x
    h1 = jnp.dot(x.astype(w1_ref.dtype), w1_ref[0],
                 preferred_element_type=jnp.float32) + b1_ref[0]
    h1 = jnp.maximum(h1, 0.0)
    h2 = jnp.dot(h1.astype(w2_ref.dtype), w2_ref[0],
                 preferred_element_type=jnp.float32) + b2_ref[0]
    x = _layer_norm(h2 + residual, ln2g_ref[0], ln2b_ref[0])

    @pl.when(layer < last)
    def _carry():
        x_scratch[...] = x                                               # skip redundant last-layer store

    @pl.when(layer == last)
    def _write():
        for b in range(bb):
            out_ref[b] = x[b * L:(b + 1) * L, :].astype(out_ref.dtype)


# ----------------------------------------------------------------------------- wrapper

def fused_encoder_call(emb, pos, top_g, top_b, mask, stk, *, n_head, d_k, d_v, d_model,
                       batch_block=None, vmem_limit_mb=56):
    B, L, D = emb.shape
    n_layers = stk["wq"].shape[0]
    # Batch block: divides per-layer weight DMA traffic by BB and fills the MXU M-dim with
    # BB*L rows.  For large B pick BB so there are >=2 batch blocks (v7x megacore) and the
    # (BB*L, d_inner) FFN activation still fits VMEM.
    bb = B if batch_block is None else batch_block
    assert B % bb == 0, "batch_block must divide the batch size"

    def rep(shape):
        r = len(shape)
        return pl.BlockSpec(shape, lambda b, l, _r=r: (0,) * _r)

    def per_layer(arr):
        shape = arr.shape
        r = len(shape)
        return pl.BlockSpec((1,) + shape[1:],
                            lambda b, l, _r=r: (l,) + (0,) * (_r - 1))

    kernel = functools.partial(_fused_encoder_kernel, bb=bb, n_head=n_head,
                               d_k=d_k, d_v=d_v, scale=float(d_model) ** 0.5)

    weight_order = ["wq", "wk", "wv", "wo", "w1", "b1", "w2", "b2",
                    "ln1_g", "ln1_b", "ln2_g", "ln2_b"]

    return pl.pallas_call(
        kernel,
        out_shape=jax.ShapeDtypeStruct((B, L, D), jnp.float32),
        grid_spec=pltpu.PrefetchScalarGridSpec(
            num_scalar_prefetch=0,
            grid=(B // bb, n_layers),
            in_specs=[
                pl.BlockSpec((bb, L, D), lambda b, l: (b, 0, 0)),     # embeddings (batch block)
                rep((L, D)),                                           # positional table
                rep((1, D)),                                           # top LN gamma
                rep((1, D)),                                           # top LN beta
                pl.BlockSpec((bb, 1, L), lambda b, l: (b, 0, 0)),      # padding mask (batch block)
            ] + [per_layer(stk[k]) for k in weight_order],
            out_specs=pl.BlockSpec((bb, L, D), lambda b, l: (b, 0, 0)),
            scratch_shapes=[pltpu.VMEM((bb * L, D), jnp.float32)],     # activation carried across layers
        ),
        compiler_params=pltpu.CompilerParams(
            dimension_semantics=("parallel", "arbitrary"),             # batch blocks parallel, layers sequential
            vmem_limit_bytes=vmem_limit_mb * 1024 * 1024,              # default fits v7x (64 MiB); raise on v6e/v5e
        ),
    )(emb, pos, top_g, top_b, mask, *[stk[k] for k in weight_order])


# ----------------------------------------------------------------------------- params / glue

def sinusoid_table(n_position, d_hid):
    pos = jnp.arange(n_position, dtype=jnp.float32)[:, None]
    i = jnp.arange(d_hid, dtype=jnp.float32)
    div = jnp.power(10000.0, 2.0 * jnp.floor(i / 2.0) / d_hid)
    angle = pos / div
    even = jnp.sin(angle)
    odd = jnp.cos(angle)
    return jnp.where((jnp.arange(d_hid) % 2) == 0, even, odd)        # (n_position, d_hid)


def init_params(key, *, vocab, d_model, n_layers, n_head, d_k, d_v, d_inner):
    keys = jax.random.split(key, 2 + n_layers)
    emb_table = jax.random.normal(keys[0], (vocab, d_model), jnp.float32) * 0.02
    top_ln_g = jnp.ones((1, d_model), jnp.float32)
    top_ln_b = jnp.zeros((1, d_model), jnp.float32)
    layers = []
    for l in range(n_layers):
        kq, kk, kv, ko, k1, k2 = jax.random.split(keys[2 + l], 6)
        layers.append(dict(
            wq=jax.random.normal(kq, (d_model, n_head * d_k), jnp.float32) * 0.05,
            wk=jax.random.normal(kk, (d_model, n_head * d_k), jnp.float32) * 0.05,
            wv=jax.random.normal(kv, (d_model, n_head * d_v), jnp.float32) * 0.05,
            wo=jax.random.normal(ko, (n_head * d_v, d_model), jnp.float32) * 0.05,
            w1=jax.random.normal(k1, (d_model, d_inner), jnp.float32) * 0.05,
            b1=jnp.zeros((1, d_inner), jnp.float32),
            w2=jax.random.normal(k2, (d_inner, d_model), jnp.float32) * 0.05,
            b2=jnp.zeros((1, d_model), jnp.float32),
            ln1_g=jnp.ones((1, d_model), jnp.float32),
            ln1_b=jnp.zeros((1, d_model), jnp.float32),
            ln2_g=jnp.ones((1, d_model), jnp.float32),
            ln2_b=jnp.zeros((1, d_model), jnp.float32),
        ))
    return emb_table, top_ln_g, top_ln_b, layers


def stack_layer_params(layers, *, n_head, d_k, d_v, w_dtype=jnp.bfloat16):
    """Stack per-layer params on a leading layer axis, fold 1/sqrt(d_k) into W_q,
    cast matmul weights to bf16 (plain JAX prep, outside the kernel).
    Head layout stays the torch `view(..., n_head, d)` column order, so per-head
    slices in the kernel are contiguous lane windows [h*d : (h+1)*d]."""
    inv_temp = 1.0 / (d_k ** 0.5)
    return {
        "wq": jnp.stack([p["wq"] * inv_temp for p in layers]).astype(w_dtype),
        "wk": jnp.stack([p["wk"] for p in layers]).astype(w_dtype),
        "wv": jnp.stack([p["wv"] for p in layers]).astype(w_dtype),
        "wo": jnp.stack([p["wo"] for p in layers]).astype(w_dtype),
        "w1": jnp.stack([p["w1"] for p in layers]).astype(w_dtype),
        "w2": jnp.stack([p["w2"] for p in layers]).astype(w_dtype),
        "b1": jnp.stack([p["b1"] for p in layers]),
        "b2": jnp.stack([p["b2"] for p in layers]),
        "ln1_g": jnp.stack([p["ln1_g"] for p in layers]),
        "ln1_b": jnp.stack([p["ln1_b"] for p in layers]),
        "ln2_g": jnp.stack([p["ln2_g"] for p in layers]),
        "ln2_b": jnp.stack([p["ln2_b"] for p in layers]),
    }


def sequence_encoder(src_word_seq, src_mask, emb_table, top_ln_g, top_ln_b, stacked,
                     *, d_model, n_head, d_k, d_v, n_position, batch_block=None):
    B, L = src_word_seq.shape
    # Glue in plain JAX: embedding gather + positional table slice.
    emb = jnp.take(emb_table, src_word_seq, axis=0).astype(jnp.float32)   # (B, L, D)
    pos = sinusoid_table(n_position, d_model)[:L]                          # (L, D)
    # One fused pallas_call: prep + every EncoderLayer (scale_emb=True, pe=True, eval mode).
    return fused_encoder_call(emb, pos, top_ln_g, top_ln_b, src_mask, stacked,
                              n_head=n_head, d_k=d_k, d_v=d_v, d_model=d_model,
                              batch_block=batch_block)
    # TODO(synk): training-mode dropout (p=0.1) is omitted; this implements the eval-mode forward.


# ----------------------------------------------------------------------------- main

if __name__ == "__main__":
    # Small demo shapes.  For production, use D / d_k / d_v / d_inner that are multiples
    # of 128 and L (or BB*L) a multiple of 8 so every vreg lane and MXU push is dense.
    B, L = 2, 8
    vocab = 50
    d_model = d_word_vec = 32
    n_layers = 2
    n_head = 2
    d_k = d_v = 16
    d_inner = 64
    n_position = 512

    key = jax.random.PRNGKey(0)
    k_tok, k_params = jax.random.split(key)

    src_word_seq = jax.random.randint(k_tok, (B, L), 0, vocab, dtype=jnp.int32)
    # Padding mask (B, 1, L): first sequence full length, second has 2 padded positions.
    lengths = jnp.array([L, L - 2], dtype=jnp.int32)
    src_mask = (jnp.arange(L)[None, :] < lengths[:, None]).astype(jnp.int32)[:, None, :]

    emb_table, top_ln_g, top_ln_b, layers = init_params(
        k_params, vocab=vocab, d_model=d_model, n_layers=n_layers,
        n_head=n_head, d_k=d_k, d_v=d_v, d_inner=d_inner)
    stacked = stack_layer_params(layers, n_head=n_head, d_k=d_k, d_v=d_v)

    out = sequence_encoder(src_word_seq, src_mask, emb_table, top_ln_g, top_ln_b, stacked,
                           d_model=d_model, n_head=n_head, d_k=d_k, d_v=d_v,
                           n_position=n_position)
    out = jax.block_until_ready(out)
    assert out.shape == (B, L, d_model)
    assert bool(jnp.all(jnp.isfinite(out)))
    print("KERNEL_OK")
</pallas_src>

<mosaic_0001>
module attributes {stable_mosaic.version = 11 : i64} {
  func.func @_fused_encoder_kernel(%arg0: i32, %arg1: i32, %arg2: memref<2x8x32xf32, #tpu.memory_space<vmem>>, %arg3: memref<8x32xf32, #tpu.memory_space<vmem>>, %arg4: memref<1x32xf32, #tpu.memory_space<vmem>>, %arg5: memref<1x32xf32, #tpu.memory_space<vmem>>, %arg6: memref<2x1x8xi32, #tpu.memory_space<vmem>>, %arg7: memref<1x32x32xbf16, #tpu.memory_space<vmem>>, %arg8: memref<1x32x32xbf16, #tpu.memory_space<vmem>>, %arg9: memref<1x32x32xbf16, #tpu.memory_space<vmem>>, %arg10: memref<1x32x32xbf16, #tpu.memory_space<vmem>>, %arg11: memref<1x32x64xbf16, #tpu.memory_space<vmem>>, %arg12: memref<1x1x64xf32, #tpu.memory_space<vmem>>, %arg13: memref<1x64x32xbf16, #tpu.memory_space<vmem>>, %arg14: memref<1x1x32xf32, #tpu.memory_space<vmem>>, %arg15: memref<1x1x32xf32, #tpu.memory_space<vmem>>, %arg16: memref<1x1x32xf32, #tpu.memory_space<vmem>>, %arg17: memref<1x1x32xf32, #tpu.memory_space<vmem>>, %arg18: memref<1x1x32xf32, #tpu.memory_space<vmem>>, %arg19: memref<2x8x32xf32, #tpu.memory_space<vmem>>, %arg20: memref<16x32xf32, #tpu.memory_space<vmem>>) attributes {dimension_semantics = [#tpu.dimension_semantics<parallel>, #tpu.dimension_semantics<arbitrary>], iteration_bounds = array<i64: 1, 2>, scalar_prefetch = 0 : i64, scratch_operands = 1 : i64, tpu.core_type = #tpu.core_type<tc>, window_params = [{transform_indices = @transform_0, window_bounds = array<i64: 2, 8, 32>}, {pipeline_mode = #tpu.pipeline_mode<synchronous>, transform_indices = @transform_1, window_bounds = array<i64: 8, 32>}, {pipeline_mode = #tpu.pipeline_mode<synchronous>, transform_indices = @transform_2, window_bounds = array<i64: 1, 32>}, {pipeline_mode = #tpu.pipeline_mode<synchronous>, transform_indices = @transform_3, window_bounds = array<i64: 1, 32>}, {transform_indices = @transform_4, window_bounds = array<i64: 2, 1, 8>}, {transform_indices = @transform_5, window_bounds = array<i64: 1, 32, 32>}, {transform_indices = @transform_6, window_bounds = array<i64: 1, 32, 32>}, {transform_indices = @transform_7, window_bounds = array<i64: 1, 32, 32>}, {transform_indices = @transform_8, window_bounds = array<i64: 1, 32, 32>}, {transform_indices = @transform_9, window_bounds = array<i64: 1, 32, 64>}, {transform_indices = @transform_10, window_bounds = array<i64: 1, 1, 64>}, {transform_indices = @transform_11, window_bounds = array<i64: 1, 64, 32>}, {transform_indices = @transform_12, window_bounds = array<i64: 1, 1, 32>}, {transform_indices = @transform_13, window_bounds = array<i64: 1, 1, 32>}, {transform_indices = @transform_14, window_bounds = array<i64: 1, 1, 32>}, {transform_indices = @transform_15, window_bounds = array<i64: 1, 1, 32>}, {transform_indices = @transform_16, window_bounds = array<i64: 1, 1, 32>}, {transform_indices = @transform_17, window_bounds = array<i64: 2, 8, 32>}]} {
    %c0_i32 = arith.constant 0 : i32
    %0 = arith.cmpi eq, %arg1, %c0_i32 : i32
    %1 = arith.extui %0 : i1 to i32
    %c0_i32_0 = arith.constant 0 : i32
    %2 = arith.cmpi ne, %1, %c0_i32_0 : i32
    scf.if %2 {
      %c0_84 = arith.constant 0 : index
      %c0_85 = arith.constant 0 : index
      %c0_86 = arith.constant 0 : index
      %186 = vector.load %arg2[%c0_84, %c0_85, %c0_86] : memref<2x8x32xf32, #tpu.memory_space<vmem>>, vector<1x8x32xf32>
      %187 = vector.shape_cast %186 : vector<1x8x32xf32> to vector<8x32xf32>
      %c1_87 = arith.constant 1 : index
      %c0_88 = arith.constant 0 : index
      %c0_89 = arith.constant 0 : index
      %188 = vector.load %arg2[%c1_87, %c0_88, %c0_89] : memref<2x8x32xf32, #tpu.memory_space<vmem>>, vector<1x8x32xf32>
      %189 = vector.shape_cast %188 : vector<1x8x32xf32> to vector<8x32xf32>
      %190 = tpu.concatenate %187, %189 in 0 : vector<8x32xf32>, vector<8x32xf32> -> vector<16x32xf32>
      %cst_90 = arith.constant 5.65685415 : f32
      %191 = vector.broadcast %cst_90 : f32 to vector<16x32xf32>
      %192 = arith.mulf %190, %191 : vector<16x32xf32>
      %c0_91 = arith.constant 0 : index
      %c0_92 = arith.constant 0 : index
      %193 = vector.load %arg3[%c0_91, %c0_92] : memref<8x32xf32, #tpu.memory_space<vmem>>, vector<8x32xf32>
      %c0_93 = arith.constant 0 : index
      %c0_94 = arith.constant 0 : index
      %194 = vector.load %arg3[%c0_93, %c0_94] : memref<8x32xf32, #tpu.memory_space<vmem>>, vector<8x32xf32>
      %195 = tpu.concatenate %193, %194 in 0 : vector<8x32xf32>, vector<8x32xf32> -> vector<16x32xf32>
      %196 = arith.addf %192, %195 : vector<16x32xf32>
      %c0_95 = arith.constant 0 : index
      %c0_96 = arith.constant 0 : index
      %197 = vector.load %arg4[%c0_95, %c0_96] : memref<1x32xf32, #tpu.memory_space<vmem>>, vector<1x32xf32>
      %c0_97 = arith.constant 0 : index
      %c0_98 = arith.constant 0 : index
      %198 = vector.load %arg5[%c0_97, %c0_98] : memref<1x32xf32, #tpu.memory_space<vmem>>, vector<1x32xf32>
      %cst_99 = arith.constant dense<0.000000e+00> : vector<16xf32>
      %199 = vector.multi_reduction <add>, %196, %cst_99 [1] : vector<16x32xf32> to vector<16xf32>
      %200 = vector.shape_cast %199 : vector<16xf32> to vector<16x1xf32>
      %cst_100 = arith.constant 3.200000e+01 : f32
      %201 = vector.broadcast %cst_100 : f32 to vector<16x1xf32>
      %202 = arith.divf %200, %201 : vector<16x1xf32>
      %203 = vector.broadcast %202 : vector<16x1xf32> to vector<16x32xf32>
      %204 = arith.subf %196, %203 : vector<16x32xf32>
      %205 = arith.mulf %204, %204 : vector<16x32xf32>
      %cst_101 = arith.constant dense<0.000000e+00> : vector<16xf32>
      %206 = vector.multi_reduction <add>, %205, %cst_101 [1] : vector<16x32xf32> to vector<16xf32>
      %207 = vector.shape_cast %206 : vector<16xf32> to vector<16x1xf32>
      %cst_102 = arith.constant 3.200000e+01 : f32
      %208 = vector.broadcast %cst_102 : f32 to vector<16x1xf32>
      %209 = arith.divf %207, %208 : vector<16x1xf32>
      %210 = vector.broadcast %202 : vector<16x1xf32> to vector<16x32xf32>
      %211 = arith.subf %196, %210 : vector<16x32xf32>
      %cst_103 = arith.constant 9.99999997E-7 : f32
      %212 = vector.broadcast %cst_103 : f32 to vector<16x1xf32>
      %213 = arith.addf %209, %212 : vector<16x1xf32>
      %214 = math.rsqrt %213 : vector<16x1xf32>
      %215 = vector.broadcast %214 : vector<16x1xf32> to vector<16x32xf32>
      %216 = arith.mulf %211, %215 : vector<16x32xf32>
      %217 = vector.broadcast %197 : vector<1x32xf32> to vector<16x32xf32>
      %218 = arith.mulf %216, %217 : vector<16x32xf32>
      %219 = vector.broadcast %198 : vector<1x32xf32> to vector<16x32xf32>
      %220 = arith.addf %218, %219 : vector<16x32xf32>
      %c0_104 = arith.constant 0 : index
      %c0_105 = arith.constant 0 : index
      %221 = vector.load %arg20[%c0_104, %c0_105] : memref<16x32xf32, #tpu.memory_space<vmem>>, vector<16x32xf32>
      tpu.vector_store %arg20[%c0_104, %c0_105], %220 {strides = array<i32>} : memref<16x32xf32, #tpu.memory_space<vmem>>, vector<16x32xf32>,
    } else {
    }
    %c0 = arith.constant 0 : index
    %c0_1 = arith.constant 0 : index
    %3 = vector.load %arg20[%c0, %c0_1] : memref<16x32xf32, #tpu.memory_space<vmem>>, vector<16x32xf32>
    %4 = arith.truncf %3 : vector<16x32xf32> to vector<16x32xbf16>
    %c0_2 = arith.constant 0 : index
    %c0_3 = arith.constant 0 : index
    %c0_4 = arith.constant 0 : index
    %5 = vector.load %arg7[%c0_2, %c0_3, %c0_4] : memref<1x32x32xbf16, #tpu.memory_space<vmem>>, vector<1x32x32xbf16>
    %6 = vector.shape_cast %5 : vector<1x32x32xbf16> to vector<32x32xbf16>
    %cst = arith.constant dense<0.000000e+00> : vector<16x32xf32>
    %7 = tpu.matmul %4, %6, %cst {dimension_numbers = #tpu.dot_dimension_numbers<[1], [0], [0], [1], [0, 0, 1, 1], [], []>} : vector<16x32xbf16>, vector<32x32xbf16>, vector<16x32xf32> -> vector<16x32xf32>
    %c0_5 = arith.constant 0 : index
    %c0_6 = arith.constant 0 : index
    %c0_7 = arith.constant 0 : index
    %8 = vector.load %arg8[%c0_5, %c0_6, %c0_7] : memref<1x32x32xbf16, #tpu.memory_space<vmem>>, vector<1x32x32xbf16>
    %9 = vector.shape_cast %8 : vector<1x32x32xbf16> to vector<32x32xbf16>
    %cst_8 = arith.constant dense<0.000000e+00> : vector<16x32xf32>
    %10 = tpu.matmul %4, %9, %cst_8 {dimension_numbers = #tpu.dot_dimension_numbers<[1], [0], [0], [1], [0, 0, 1, 1], [], []>} : vector<16x32xbf16>, vector<32x32xbf16>, vector<16x32xf32> -> vector<16x32xf32>
    %c0_9 = arith.constant 0 : index
    %c0_10 = arith.constant 0 : index
    %c0_11 = arith.constant 0 : index
    %11 = vector.load %arg9[%c0_9, %c0_10, %c0_11] : memref<1x32x32xbf16, #tpu.memory_space<vmem>>, vector<1x32x32xbf16>
    %12 = vector.shape_cast %11 : vector<1x32x32xbf16> to vector<32x32xbf16>
    %cst_12 = arith.constant dense<0.000000e+00> : vector<16x32xf32>
    %13 = tpu.matmul %4, %12, %cst_12 {dimension_numbers = #tpu.dot_dimension_numbers<[1], [0], [0], [1], [0, 0, 1, 1], [], []>} : vector<16x32xbf16>, vector<32x32xbf16>, vector<16x32xf32> -> vector<16x32xf32>
    %14 = arith.truncf %13 : vector<16x32xf32> to vector<16x32xbf16>
    %c0_13 = arith.constant 0 : index
    %c0_14 = arith.constant 0 : index
    %c0_15 = arith.constant 0 : index
    %15 = vector.load %arg6[%c0_13, %c0_14, %c0_15] : memref<2x1x8xi32, #tpu.memory_space<vmem>>, vector<1x1x8xi32>
    %16 = vector.shape_cast %15 : vector<1x1x8xi32> to vector<1x8xi32>
    %c0_i32_16 = arith.constant 0 : i32
    %17 = vector.broadcast %c0_i32_16 : i32 to vector<1x8xi32>
    %18 = arith.cmpi eq, %16, %17 : vector<1x8xi32>
    %cst_17 = arith.constant -1.000000e+09 : f32
    %cst_18 = arith.constant 0.000000e+00 : f32
    %19 = vector.broadcast %cst_17 : f32 to vector<1x8xf32>
    %20 = vector.broadcast %cst_18 : f32 to vector<1x8xf32>
    %21 = arith.select %18, %19, %20 : vector<1x8xi1>, vector<1x8xf32>
    %22 = vector.shape_cast %21 : vector<1x8xf32> to vector<1x8xf32>
    %23 = vector.broadcast %22 : vector<1x8xf32> to vector<8x8xf32>
    %24 = vector.extract_strided_slice %7 {offsets = [0, 0], sizes = [8, 16], strides = [1, 1]} : vector<16x32xf32> to vector<8x16xf32>
    %25 = vector.extract_strided_slice %10 {offsets = [0, 0], sizes = [8, 16], strides = [1, 1]} : vector<16x32xf32> to vector<8x16xf32>
    %26 = vector.extract_strided_slice %14 {offsets = [0, 0], sizes = [8, 16], strides = [1, 1]} : vector<16x32xbf16> to vector<8x16xbf16>
    %cst_19 = arith.constant dense<0.000000e+00> : vector<8x8xf32>
    %27 = tpu.matmul %24, %25, %cst_19 {dimension_numbers = #tpu.dot_dimension_numbers<[1], [1], [0], [0], [0, 0, 1, 0], [], []>} : vector<8x16xf32>, vector<8x16xf32>, vector<8x8xf32> -> vector<8x8xf32>
    %28 = arith.addf %27, %23 : vector<8x8xf32>
    %cst_20 = arith.constant dense<0xFF800000> : vector<8xf32>
    %29 = vector.multi_reduction <maximumf>, %28, %cst_20 [1] : vector<8x8xf32> to vector<8xf32>
    %30 = vector.shape_cast %29 : vector<8xf32> to vector<8x1xf32>
    %31 = vector.broadcast %30 : vector<8x1xf32> to vector<8x8xf32>
    %32 = arith.subf %28, %31 : vector<8x8xf32>
    %33 = math.exp %32 : vector<8x8xf32>
    %cst_21 = arith.constant dense<0.000000e+00> : vector<8xf32>
    %34 = vector.multi_reduction <add>, %33, %cst_21 [1] : vector<8x8xf32> to vector<8xf32>
    %35 = vector.shape_cast %34 : vector<8xf32> to vector<8x1xf32>
    %36 = tpu.reciprocal %35 {approx = true} : vector<8x1xf32> -> vector<8x1xf32>
    %37 = vector.broadcast %36 : vector<8x1xf32> to vector<8x8xf32>
    %38 = arith.mulf %33, %37 : vector<8x8xf32>
    %39 = arith.truncf %38 : vector<8x8xf32> to vector<8x8xbf16>
    %cst_22 = arith.constant dense<0.000000e+00> : vector<8x16xf32>
    %40 = tpu.matmul %39, %26, %cst_22 {dimension_numbers = #tpu.dot_dimension_numbers<[1], [0], [0], [1], [0, 0, 1, 1], [], []>} : vector<8x8xbf16>, vector<8x16xbf16>, vector<8x16xf32> -> vector<8x16xf32>
    %41 = vector.extract_strided_slice %7 {offsets = [0, 16], sizes = [8, 16], strides = [1, 1]} : vector<16x32xf32> to vector<8x16xf32>
    %42 = vector.extract_strided_slice %10 {offsets = [0, 16], sizes = [8, 16], strides = [1, 1]} : vector<16x32xf32> to vector<8x16xf32>
    %43 = vector.extract_strided_slice %14 {offsets = [0, 16], sizes = [8, 16], strides = [1, 1]} : vector<16x32xbf16> to vector<8x16xbf16>
    %cst_23 = arith.constant dense<0.000000e+00> : vector<8x8xf32>
    %44 = tpu.matmul %41, %42, %cst_23 {dimension_numbers = #tpu.dot_dimension_numbers<[1], [1], [0], [0], [0, 0, 1, 0], [], []>} : vector<8x16xf32>, vector<8x16xf32>, vector<8x8xf32> -> vector<8x8xf32>
    %45 = arith.addf %44, %23 : vector<8x8xf32>
    %cst_24 = arith.constant dense<0xFF800000> : vector<8xf32>
    %46 = vector.multi_reduction <maximumf>, %45, %cst_24 [1] : vector<8x8xf32> to vector<8xf32>
    %47 = vector.shape_cast %46 : vector<8xf32> to vector<8x1xf32>
    %48 = vector.broadcast %47 : vector<8x1xf32> to vector<8x8xf32>
    %49 = arith.subf %45, %48 : vector<8x8xf32>
    %50 = math.exp %49 : vector<8x8xf32>
    %cst_25 = arith.constant dense<0.000000e+00> : vector<8xf32>
    %51 = vector.multi_reduction <add>, %50, %cst_25 [1] : vector<8x8xf32> to vector<8xf32>
    %52 = vector.shape_cast %51 : vector<8xf32> to vector<8x1xf32>
    %53 = tpu.reciprocal %52 {approx = true} : vector<8x1xf32> -> vector<8x1xf32>
    %54 = vector.broadcast %53 : vector<8x1xf32> to vector<8x8xf32>
    %55 = arith.mulf %50, %54 : vector<8x8xf32>
    %56 = arith.truncf %55 : vector<8x8xf32> to vector<8x8xbf16>
    %cst_26 = arith.constant dense<0.000000e+00> : vector<8x16xf32>
    %57 = tpu.matmul %56, %43, %cst_26 {dimension_numbers = #tpu.dot_dimension_numbers<[1], [0], [0], [1], [0, 0, 1, 1], [], []>} : vector<8x8xbf16>, vector<8x16xbf16>, vector<8x16xf32> -> vector<8x16xf32>
    %58 = tpu.concatenate %40, %57 in 1 : vector<8x16xf32>, vector<8x16xf32> -> vector<8x32xf32>
    %c1 = arith.constant 1 : index
    %c0_27 = arith.constant 0 : index
    %c0_28 = arith.constant 0 : index
    %59 = vector.load %arg6[%c1, %c0_27, %c0_28] : memref<2x1x8xi32, #tpu.memory_space<vmem>>, vector<1x1x8xi32>
    %60 = vector.shape_cast %59 : vector<1x1x8xi32> to vector<1x8xi32>
    %c0_i32_29 = arith.constant 0 : i32
    %61 = vector.broadcast %c0_i32_29 : i32 to vector<1x8xi32>
    %62 = arith.cmpi eq, %60, %61 : vector<1x8xi32>
    %cst_30 = arith.constant -1.000000e+09 : f32
    %cst_31 = arith.constant 0.000000e+00 : f32
    %63 = vector.broadcast %cst_30 : f32 to vector<1x8xf32>
    %64 = vector.broadcast %cst_31 : f32 to vector<1x8xf32>
    %65 = arith.select %62, %63, %64 : vector<1x8xi1>, vector<1x8xf32>
    %66 = vector.shape_cast %65 : vector<1x8xf32> to vector<1x8xf32>
    %67 = vector.broadcast %66 : vector<1x8xf32> to vector<8x8xf32>
    %68 = vector.extract_strided_slice %7 {offsets = [8, 0], sizes = [8, 16], strides = [1, 1]} : vector<16x32xf32> to vector<8x16xf32>
    %69 = vector.extract_strided_slice %10 {offsets = [8, 0], sizes = [8, 16], strides = [1, 1]} : vector<16x32xf32> to vector<8x16xf32>
    %70 = vector.extract_strided_slice %14 {offsets = [8, 0], sizes = [8, 16], strides = [1, 1]} : vector<16x32xbf16> to vector<8x16xbf16>
    %cst_32 = arith.constant dense<0.000000e+00> : vector<8x8xf32>
    %71 = tpu.matmul %68, %69, %cst_32 {dimension_numbers = #tpu.dot_dimension_numbers<[1], [1], [0], [0], [0, 0, 1, 0], [], []>} : vector<8x16xf32>, vector<8x16xf32>, vector<8x8xf32> -> vector<8x8xf32>
    %72 = arith.addf %71, %67 : vector<8x8xf32>
    %cst_33 = arith.constant dense<0xFF800000> : vector<8xf32>
    %73 = vector.multi_reduction <maximumf>, %72, %cst_33 [1] : vector<8x8xf32> to vector<8xf32>
    %74 = vector.shape_cast %73 : vector<8xf32> to vector<8x1xf32>
    %75 = vector.broadcast %74 : vector<8x1xf32> to vector<8x8xf32>
    %76 = arith.subf %72, %75 : vector<8x8xf32>
    %77 = math.exp %76 : vector<8x8xf32>
    %cst_34 = arith.constant dense<0.000000e+00> : vector<8xf32>
    %78 = vector.multi_reduction <add>, %77, %cst_34 [1] : vector<8x8xf32> to vector<8xf32>
    %79 = vector.shape_cast %78 : vector<8xf32> to vector<8x1xf32>
    %80 = tpu.reciprocal %79 {approx = true} : vector<8x1xf32> -> vector<8x1xf32>
    %81 = vector.broadcast %80 : vector<8x1xf32> to vector<8x8xf32>
    %82 = arith.mulf %77, %81 : vector<8x8xf32>
    %83 = arith.truncf %82 : vector<8x8xf32> to vector<8x8xbf16>
    %cst_35 = arith.constant dense<0.000000e+00> : vector<8x16xf32>
    %84 = tpu.matmul %83, %70, %cst_35 {dimension_numbers = #tpu.dot_dimension_numbers<[1], [0], [0], [1], [0, 0, 1, 1], [], []>} : vector<8x8xbf16>, vector<8x16xbf16>, vector<8x16xf32> -> vector<8x16xf32>
    %85 = vector.extract_strided_slice %7 {offsets = [8, 16], sizes = [8, 16], strides = [1, 1]} : vector<16x32xf32> to vector<8x16xf32>
    %86 = vector.extract_strided_slice %10 {offsets = [8, 16], sizes = [8, 16], strides = [1, 1]} : vector<16x32xf32> to vector<8x16xf32>
    %87 = vector.extract_strided_slice %14 {offsets = [8, 16], sizes = [8, 16], strides = [1, 1]} : vector<16x32xbf16> to vector<8x16xbf16>
    %cst_36 = arith.constant dense<0.000000e+00> : vector<8x8xf32>
    %88 = tpu.matmul %85, %86, %cst_36 {dimension_numbers = #tpu.dot_dimension_numbers<[1], [1], [0], [0], [0, 0, 1, 0], [], []>} : vector<8x16xf32>, vector<8x16xf32>, vector<8x8xf32> -> vector<8x8xf32>
    %89 = arith.addf %88, %67 : vector<8x8xf32>
    %cst_37 = arith.constant dense<0xFF800000> : vector<8xf32>
    %90 = vector.multi_reduction <maximumf>, %89, %cst_37 [1] : vector<8x8xf32> to vector<8xf32>
    %91 = vector.shape_cast %90 : vector<8xf32> to vector<8x1xf32>
    %92 = vector.broadcast %91 : vector<8x1xf32> to vector<8x8xf32>
    %93 = arith.subf %89, %92 : vector<8x8xf32>
    %94 = math.exp %93 : vector<8x8xf32>
    %cst_38 = arith.constant dense<0.000000e+00> : vector<8xf32>
    %95 = vector.multi_reduction <add>, %94, %cst_38 [1] : vector<8x8xf32> to vector<8xf32>
    %96 = vector.shape_cast %95 : vector<8xf32> to vector<8x1xf32>
    %97 = tpu.reciprocal %96 {approx = true} : vector<8x1xf32> -> vector<8x1xf32>
    %98 = vector.broadcast %97 : vector<8x1xf32> to vector<8x8xf32>
    %99 = arith.mulf %94, %98 : vector<8x8xf32>
    %100 = arith.truncf %99 : vector<8x8xf32> to vector<8x8xbf16>
    %cst_39 = arith.constant dense<0.000000e+00> : vector<8x16xf32>
    %101 = tpu.matmul %100, %87, %cst_39 {dimension_numbers = #tpu.dot_dimension_numbers<[1], [0], [0], [1], [0, 0, 1, 1], [], []>} : vector<8x8xbf16>, vector<8x16xbf16>, vector<8x16xf32> -> vector<8x16xf32>
    %102 = tpu.concatenate %84, %101 in 1 : vector<8x16xf32>, vector<8x16xf32> -> vector<8x32xf32>
    %103 = tpu.concatenate %58, %102 in 0 : vector<8x32xf32>, vector<8x32xf32> -> vector<16x32xf32>
    %104 = arith.truncf %103 : vector<16x32xf32> to vector<16x32xbf16>
    %c0_40 = arith.constant 0 : index
    %c0_41 = arith.constant 0 : index
    %c0_42 = arith.constant 0 : index
    %105 = vector.load %arg10[%c0_40, %c0_41, %c0_42] : memref<1x32x32xbf16, #tpu.memory_space<vmem>>, vector<1x32x32xbf16>
    %106 = vector.shape_cast %105 : vector<1x32x32xbf16> to vector<32x32xbf16>
    %cst_43 = arith.constant dense<0.000000e+00> : vector<16x32xf32>
    %107 = tpu.matmul %104, %106, %cst_43 {dimension_numbers = #tpu.dot_dimension_numbers<[1], [0], [0], [1], [0, 0, 1, 1], [], []>} : vector<16x32xbf16>, vector<32x32xbf16>, vector<16x32xf32> -> vector<16x32xf32>
    %108 = arith.addf %107, %3 : vector<16x32xf32>
    %c0_44 = arith.constant 0 : index
    %c0_45 = arith.constant 0 : index
    %c0_46 = arith.constant 0 : index
    %109 = vector.load %arg15[%c0_44, %c0_45, %c0_46] : memref<1x1x32xf32, #tpu.memory_space<vmem>>, vector<1x1x32xf32>
    %110 = vector.shape_cast %109 : vector<1x1x32xf32> to vector<1x32xf32>
    %c0_47 = arith.constant 0 : index
    %c0_48 = arith.constant 0 : index
    %c0_49 = arith.constant 0 : index
    %111 = vector.load %arg16[%c0_47, %c0_48, %c0_49] : memref<1x1x32xf32, #tpu.memory_space<vmem>>, vector<1x1x32xf32>
    %112 = vector.shape_cast %111 : vector<1x1x32xf32> to vector<1x32xf32>
    %cst_50 = arith.constant dense<0.000000e+00> : vector<16xf32>
    %113 = vector.multi_reduction <add>, %108, %cst_50 [1] : vector<16x32xf32> to vector<16xf32>
    %114 = vector.shape_cast %113 : vector<16xf32> to vector<16x1xf32>
    %cst_51 = arith.constant 3.200000e+01 : f32
    %115 = vector.broadcast %cst_51 : f32 to vector<16x1xf32>
    %116 = arith.divf %114, %115 : vector<16x1xf32>
    %117 = vector.broadcast %116 : vector<16x1xf32> to vector<16x32xf32>
    %118 = arith.subf %108, %117 : vector<16x32xf32>
    %119 = arith.mulf %118, %118 : vector<16x32xf32>
    %cst_52 = arith.constant dense<0.000000e+00> : vector<16xf32>
    %120 = vector.multi_reduction <add>, %119, %cst_52 [1] : vector<16x32xf32> to vector<16xf32>
    %121 = vector.shape_cast %120 : vector<16xf32> to vector<16x1xf32>
    %cst_53 = arith.constant 3.200000e+01 : f32
    %122 = vector.broadcast %cst_53 : f32 to vector<16x1xf32>
    %123 = arith.divf %121, %122 : vector<16x1xf32>
    %124 = vector.broadcast %116 : vector<16x1xf32> to vector<16x32xf32>
    %125 = arith.subf %108, %124 : vector<16x32xf32>
    %cst_54 = arith.constant 9.99999997E-7 : f32
    %126 = vector.broadcast %cst_54 : f32 to vector<16x1xf32>
    %127 = arith.addf %123, %126 : vector<16x1xf32>
    %128 = math.rsqrt %127 : vector<16x1xf32>
    %129 = vector.broadcast %128 : vector<16x1xf32> to vector<16x32xf32>
    %130 = arith.mulf %125, %129 : vector<16x32xf32>
    %131 = vector.broadcast %110 : vector<1x32xf32> to vector<16x32xf32>
    %132 = arith.mulf %130, %131 : vector<16x32xf32>
    %133 = vector.broadcast %112 : vector<1x32xf32> to vector<16x32xf32>
    %134 = arith.addf %132, %133 : vector<16x32xf32>
    %135 = arith.truncf %134 : vector<16x32xf32> to vector<16x32xbf16>
    %c0_55 = arith.constant 0 : index
    %c0_56 = arith.constant 0 : index
    %c0_57 = arith.constant 0 : index
    %136 = vector.load %arg11[%c0_55, %c0_56, %c0_57] : memref<1x32x64xbf16, #tpu.memory_space<vmem>>, vector<1x32x64xbf16>
    %137 = vector.shape_cast %136 : vector<1x32x64xbf16> to vector<32x64xbf16>
    %cst_58 = arith.constant dense<0.000000e+00> : vector<16x64xf32>
    %138 = tpu.matmul %135, %137, %cst_58 {dimension_numbers = #tpu.dot_dimension_numbers<[1], [0], [0], [1], [0, 0, 1, 1], [], []>} : vector<16x32xbf16>, vector<32x64xbf16>, vector<16x64xf32> -> vector<16x64xf32>
    %c0_59 = arith.constant 0 : index
    %c0_60 = arith.constant 0 : index
    %c0_61 = arith.constant 0 : index
    %139 = vector.load %arg12[%c0_59, %c0_60, %c0_61] : memref<1x1x64xf32, #tpu.memory_space<vmem>>, vector<1x1x64xf32>
    %140 = vector.shape_cast %139 : vector<1x1x64xf32> to vector<1x64xf32>
    %141 = vector.broadcast %140 : vector<1x64xf32> to vector<16x64xf32>
    %142 = arith.addf %138, %141 : vector<16x64xf32>
    %cst_62 = arith.constant 0.000000e+00 : f32
    %143 = vector.broadcast %cst_62 : f32 to vector<16x64xf32>
    %144 = arith.maximumf %142, %143 : vector<16x64xf32>
    %145 = arith.truncf %144 : vector<16x64xf32> to vector<16x64xbf16>
    %c0_63 = arith.constant 0 : index
    %c0_64 = arith.constant 0 : index
    %c0_65 = arith.constant 0 : index
    %146 = vector.load %arg13[%c0_63, %c0_64, %c0_65] : memref<1x64x32xbf16, #tpu.memory_space<vmem>>, vector<1x64x32xbf16>
    %147 = vector.shape_cast %146 : vector<1x64x32xbf16> to vector<64x32xbf16>
    %cst_66 = arith.constant dense<0.000000e+00> : vector<16x32xf32>
    %148 = tpu.matmul %145, %147, %cst_66 {dimension_numbers = #tpu.dot_dimension_numbers<[1], [0], [0], [1], [0, 0, 1, 1], [], []>} : vector<16x64xbf16>, vector<64x32xbf16>, vector<16x32xf32> -> vector<16x32xf32>
    %c0_67 = arith.constant 0 : index
    %c0_68 = arith.constant 0 : index
    %c0_69 = arith.constant 0 : index
    %149 = vector.load %arg14[%c0_67, %c0_68, %c0_69] : memref<1x1x32xf32, #tpu.memory_space<vmem>>, vector<1x1x32xf32>
    %150 = vector.shape_cast %149 : vector<1x1x32xf32> to vector<1x32xf32>
    %151 = vector.broadcast %150 : vector<1x32xf32> to vector<16x32xf32>
    %152 = arith.addf %148, %151 : vector<16x32xf32>
    %153 = arith.addf %152, %134 : vector<16x32xf32>
    %c0_70 = arith.constant 0 : index
    %c0_71 = arith.constant 0 : index
    %c0_72 = arith.constant 0 : index
    %154 = vector.load %arg17[%c0_70, %c0_71, %c0_72] : memref<1x1x32xf32, #tpu.memory_space<vmem>>, vector<1x1x32xf32>
    %155 = vector.shape_cast %154 : vector<1x1x32xf32> to vector<1x32xf32>
    %c0_73 = arith.constant 0 : index
    %c0_74 = arith.constant 0 : index
    %c0_75 = arith.constant 0 : index
    %156 = vector.load %arg18[%c0_73, %c0_74, %c0_75] : memref<1x1x32xf32, #tpu.memory_space<vmem>>, vector<1x1x32xf32>
    %157 = vector.shape_cast %156 : vector<1x1x32xf32> to vector<1x32xf32>
    %cst_76 = arith.constant dense<0.000000e+00> : vector<16xf32>
    %158 = vector.multi_reduction <add>, %153, %cst_76 [1] : vector<16x32xf32> to vector<16xf32>
    %159 = vector.shape_cast %158 : vector<16xf32> to vector<16x1xf32>
    %cst_77 = arith.constant 3.200000e+01 : f32
    %160 = vector.broadcast %cst_77 : f32 to vector<16x1xf32>
    %161 = arith.divf %159, %160 : vector<16x1xf32>
    %162 = vector.broadcast %161 : vector<16x1xf32> to vector<16x32xf32>
    %163 = arith.subf %153, %162 : vector<16x32xf32>
    %164 = arith.mulf %163, %163 : vector<16x32xf32>
    %cst_78 = arith.constant dense<0.000000e+00> : vector<16xf32>
    %165 = vector.multi_reduction <add>, %164, %cst_78 [1] : vector<16x32xf32> to vector<16xf32>
    %166 = vector.shape_cast %165 : vector<16xf32> to vector<16x1xf32>
    %cst_79 = arith.constant 3.200000e+01 : f32
    %167 = vector.broadcast %cst_79 : f32 to vector<16x1xf32>
    %168 = arith.divf %166, %167 : vector<16x1xf32>
    %169 = vector.broadcast %161 : vector<16x1xf32> to vector<16x32xf32>
    %170 = arith.subf %153, %169 : vector<16x32xf32>
    %cst_80 = arith.constant 9.99999997E-7 : f32
    %171 = vector.broadcast %cst_80 : f32 to vector<16x1xf32>
    %172 = arith.addf %168, %171 : vector<16x1xf32>
    %173 = math.rsqrt %172 : vector<16x1xf32>
    %174 = vector.broadcast %173 : vector<16x1xf32> to vector<16x32xf32>
    %175 = arith.mulf %170, %174 : vector<16x32xf32>
    %176 = vector.broadcast %155 : vector<1x32xf32> to vector<16x32xf32>
    %177 = arith.mulf %175, %176 : vector<16x32xf32>
    %178 = vector.broadcast %157 : vector<1x32xf32> to vector<16x32xf32>
    %179 = arith.addf %177, %178 : vector<16x32xf32>
    %c1_i32 = arith.constant 1 : i32
    %180 = arith.cmpi slt, %arg1, %c1_i32 : i32
    %181 = arith.extui %180 : i1 to i32
    %c0_i32_81 = arith.constant 0 : i32
    %182 = arith.cmpi ne, %181, %c0_i32_81 : i32
    scf.if %182 {
      %c0_84 = arith.constant 0 : index
      %c0_85 = arith.constant 0 : index
      %186 = vector.load %arg20[%c0_84, %c0_85] : memref<16x32xf32, #tpu.memory_space<vmem>>, vector<16x32xf32>
      tpu.vector_store %arg20[%c0_84, %c0_85], %179 {strides = array<i32>} : memref<16x32xf32, #tpu.memory_space<vmem>>, vector<16x32xf32>,
    } else {
    }
    %c1_i32_82 = arith.constant 1 : i32
    %183 = arith.cmpi eq, %arg1, %c1_i32_82 : i32
    %184 = arith.extui %183 : i1 to i32
    %c0_i32_83 = arith.constant 0 : i32
    %185 = arith.cmpi ne, %184, %c0_i32_83 : i32
    scf.if %185 {
      %186 = vector.extract_strided_slice %179 {offsets = [0, 0], sizes = [8, 32], strides = [1, 1]} : vector<16x32xf32> to vector<8x32xf32>
      %c0_84 = arith.constant 0 : index
      %c0_85 = arith.constant 0 : index
      %c0_86 = arith.constant 0 : index
      %187 = vector.load %arg19[%c0_84, %c0_85, %c0_86] : memref<2x8x32xf32, #tpu.memory_space<vmem>>, vector<1x8x32xf32>
      %188 = vector.shape_cast %187 : vector<1x8x32xf32> to vector<8x32xf32>
      %189 = vector.shape_cast %186 : vector<8x32xf32> to vector<1x8x32xf32>
      tpu.vector_store %arg19[%c0_84, %c0_85, %c0_86], %189 {strides = array<i32>} : memref<2x8x32xf32, #tpu.memory_space<vmem>>, vector<1x8x32xf32>,
      %190 = vector.extract_strided_slice %179 {offsets = [8, 0], sizes = [8, 32], strides = [1, 1]} : vector<16x32xf32> to vector<8x32xf32>
      %c1_87 = arith.constant 1 : index
      %c0_88 = arith.constant 0 : index
      %c0_89 = arith.constant 0 : index
      %191 = vector.load %arg19[%c1_87, %c0_88, %c0_89] : memref<2x8x32xf32, #tpu.memory_space<vmem>>, vector<1x8x32xf32>
      %192 = vector.shape_cast %191 : vector<1x8x32xf32> to vector<8x32xf32>
      %193 = vector.shape_cast %190 : vector<8x32xf32> to vector<1x8x32xf32>
      tpu.vector_store %arg19[%c1_87, %c0_88, %c0_89], %193 {strides = array<i32>} : memref<2x8x32xf32, #tpu.memory_space<vmem>>, vector<1x8x32xf32>,
    } else {
    }
    return
  }
  func.func @transform_0(%arg0: i32, %arg1: i32) -> (i32, i32, i32) {
    %c0_i32 = arith.constant 0 : i32
    %c0_i32_0 = arith.constant 0 : i32
    %c0_i32_1 = arith.constant 0 : i32
    return %arg0, %c0_i32, %c0_i32_0 : i32, i32, i32
  }
  func.func @transform_1(%arg0: i32, %arg1: i32) -> (i32, i32) {
    %c0_i32 = arith.constant 0 : i32
    %c0_i32_0 = arith.constant 0 : i32
    %c0_i32_1 = arith.constant 0 : i32
    return %c0_i32, %c0_i32_0 : i32, i32
  }
  func.func @transform_2(%arg0: i32, %arg1: i32) -> (i32, i32) {
    %c0_i32 = arith.constant 0 : i32
    %c0_i32_0 = arith.constant 0 : i32
    %c0_i32_1 = arith.constant 0 : i32
    return %c0_i32, %c0_i32_0 : i32, i32
  }
  func.func @transform_3(%arg0: i32, %arg1: i32) -> (i32, i32) {
    %c0_i32 = arith.constant 0 : i32
    %c0_i32_0 = arith.constant 0 : i32
    %c0_i32_1 = arith.constant 0 : i32
    return %c0_i32, %c0_i32_0 : i32, i32
  }
  func.func @transform_4(%arg0: i32, %arg1: i32) -> (i32, i32, i32) {
    %c0_i32 = arith.constant 0 : i32
    %c0_i32_0 = arith.constant 0 : i32
    %c0_i32_1 = arith.constant 0 : i32
    return %arg0, %c0_i32, %c0_i32_0 : i32, i32, i32
  }
  func.func @transform_5(%arg0: i32, %arg1: i32) -> (i32, i32, i32) {
    %c0_i32 = arith.constant 0 : i32
    %c0_i32_0 = arith.constant 0 : i32
    %c0_i32_1 = arith.constant 0 : i32
    return %arg1, %c0_i32, %c0_i32_0 : i32, i32, i32
  }
  func.func @transform_6(%arg0: i32, %arg1: i32) -> (i32, i32, i32) {
    %c0_i32 = arith.constant 0 : i32
    %c0_i32_0 = arith.constant 0 : i32
    %c0_i32_1 = arith.constant 0 : i32
    return %arg1, %c0_i32, %c0_i32_0 : i32, i32, i32
  }
  func.func @transform_7(%arg0: i32, %arg1: i32) -> (i32, i32, i32) {
    %c0_i32 = arith.constant 0 : i32
    %c0_i32_0 = arith.constant 0 : i32
    %c0_i32_1 = arith.constant 0 : i32
    return %arg1, %c0_i32, %c0_i32_0 : i32, i32, i32
  }
  func.func @transform_8(%arg0: i32, %arg1: i32) -> (i32, i32, i32) {
    %c0_i32 = arith.constant 0 : i32
    %c0_i32_0 = arith.constant 0 : i32
    %c0_i32_1 = arith.constant 0 : i32
    return %arg1, %c0_i32, %c0_i32_0 : i32, i32, i32
  }
  func.func @transform_9(%arg0: i32, %arg1: i32) -> (i32, i32, i32) {
    %c0_i32 = arith.constant 0 : i32
    %c0_i32_0 = arith.constant 0 : i32
    %c0_i32_1 = arith.constant 0 : i32
    return %arg1, %c0_i32, %c0_i32_0 : i32, i32, i32
  }
  func.func @transform_10(%arg0: i32, %arg1: i32) -> (i32, i32, i32) {
    %c0_i32 = arith.constant 0 : i32
    %c0_i32_0 = arith.constant 0 : i32
    %c0_i32_1 = arith.constant 0 : i32
    return %arg1, %c0_i32, %c0_i32_0 : i32, i32, i32
  }
  func.func @transform_11(%arg0: i32, %arg1: i32) -> (i32, i32, i32) {
    %c0_i32 = arith.constant 0 : i32
    %c0_i32_0 = arith.constant 0 : i32
    %c0_i32_1 = arith.constant 0 : i32
    return %arg1, %c0_i32, %c0_i32_0 : i32, i32, i32
  }
  func.func @transform_12(%arg0: i32, %arg1: i32) -> (i32, i32, i32) {
    %c0_i32 = arith.constant 0 : i32
    %c0_i32_0 = arith.constant 0 : i32
    %c0_i32_1 = arith.constant 0 : i32
    return %arg1, %c0_i32, %c0_i32_0 : i32, i32, i32
  }
  func.func @transform_13(%arg0: i32, %arg1: i32) -> (i32, i32, i32) {
    %c0_i32 = arith.constant 0 : i32
    %c0_i32_0 = arith.constant 0 : i32
    %c0_i32_1 = arith.constant 0 : i32
    return %arg1, %c0_i32, %c0_i32_0 : i32, i32, i32
  }
  func.func @transform_14(%arg0: i32, %arg1: i32) -> (i32, i32, i32) {
    %c0_i32 = arith.constant 0 : i32
    %c0_i32_0 = arith.constant 0 : i32
    %c0_i32_1 = arith.constant 0 : i32
    return %arg1, %c0_i32, %c0_i32_0 : i32, i32, i32
  }
  func.func @transform_15(%arg0: i32, %arg1: i32) -> (i32, i32, i32) {
    %c0_i32 = arith.constant 0 : i32
    %c0_i32_0 = arith.constant 0 : i32
    %c0_i32_1 = arith.constant 0 : i32
    return %arg1, %c0_i32, %c0_i32_0 : i32, i32, i32
  }
  func.func @transform_16(%arg0: i32, %arg1: i32) -> (i32, i32, i32) {
    %c0_i32 = arith.constant 0 : i32
    %c0_i32_0 = arith.constant 0 : i32
    %c0_i32_1 = arith.constant 0 : i32
    return %arg1, %c0_i32, %c0_i32_0 : i32, i32, i32
  }
  func.func @transform_17(%arg0: i32, %arg1: i32) -> (i32, i32, i32) {
    %c0_i32 = arith.constant 0 : i32
    %c0_i32_0 = arith.constant 0 : i32
    %c0_i32_1 = arith.constant 0 : i32
    return %arg0, %c0_i32, %c0_i32_0 : i32, i32, i32
  }
}

</mosaic_0001>

<llo_original>
// kernel: tpu_custom_call.1
$region0: #{tpu_custom_call.1}
  #allocation0 [shape = 'u32[]', space=smem, size = 0x4, offset = 0x4, fixed_abs, tag = 'smem constant byte address 0x4 - core index']
  #allocation1 [shape = 'u32[72,128]{1,0:T(1,128)}', space=vmem, size = 0x9000, scoped, tag = 'internal scratch']
  #allocation2 [shape = 'f32[16,32]{1,0:T(8,128)}', space=vmem, size = 0x2000, scoped, tag = 'scratch operand']
  %s0 = inlined_call_operand.hbm [shape: f32[2,8,32], index: 0, kind: input, shape index: {}]
  %s1 = inlined_call_operand.hbm [shape: f32[8,32], index: 1, kind: input, shape index: {}]
  %s2 = inlined_call_operand.vmem [shape: f32[1,32], index: 2, kind: input, shape index: {}]
  %s3 = inlined_call_operand.hbm [shape: f32[1,32], index: 3, kind: input, shape index: {}]
  %s4 = inlined_call_operand.vmem [shape: s32[2,1,8], index: 4, kind: input, shape index: {}]
  %s5 = inlined_call_operand.vmem [shape: bf16[2,32,32], index: 5, kind: input, shape index: {}]
  %s6 = inlined_call_operand.vmem [shape: bf16[2,32,32], index: 6, kind: input, shape index: {}]
  %s7 = inlined_call_operand.vmem [shape: bf16[2,32,32], index: 7, kind: input, shape index: {}]
  %s8 = inlined_call_operand.hbm [shape: bf16[2,32,32], index: 8, kind: input, shape index: {}]
  %s9 = inlined_call_operand.hbm [shape: bf16[2,32,64], index: 9, kind: input, shape index: {}]
  %s10 = inlined_call_operand.vmem [shape: f32[2,1,64], index: 10, kind: input, shape index: {}]
  %s11 = inlined_call_operand.vmem [shape: bf16[2,64,32], index: 11, kind: input, shape index: {}]
  %s12 = inlined_call_operand.vmem [shape: f32[2,1,32], index: 12, kind: input, shape index: {}]
  %s13 = inlined_call_operand.vmem [shape: f32[2,1,32], index: 13, kind: input, shape index: {}]
  %s14 = inlined_call_operand.vmem [shape: f32[2,1,32], index: 14, kind: input, shape index: {}]
  %s15 = inlined_call_operand.vmem [shape: f32[2,1,32], index: 15, kind: input, shape index: {}]
  %s16 = inlined_call_operand.vmem [shape: f32[2,1,32], index: 16, kind: input, shape index: {}]
  %s17 = inlined_call_operand.hbm [shape: f32[2,8,32], index: 17, kind: output, shape index: {}]
  %s18 = sld [smem:[#allocation0]]
  $region133: #{tpu_custom_call.1} parent=0
    _
  %s20 = ssub.s32 1, %s18
  %s21 = scalar_select 0, %s20, %s18
  $region1: #{tpu_custom_call.1} parent=0
    #allocation3 [shape = 'u8[8192]{0}', space=vmem, size = 0x2000, scoped, tag = 'input window, operand 0, single buffered']
    #allocation4 [shape = 's32[2]{0}', space=sflag, size = 0x8, scoped, tag = 'scoped memory for tpu_custom_call.1']
    #allocation5 [shape = 's32[2]{0}', space=sflag, size = 0x8, scoped, tag = 'scoped memory for tpu_custom_call.1']
    #allocation6 [shape = 'u8[4096]{0}', space=vmem, size = 0x1000, scoped, tag = 'input window, operand 1, single buffered']
    #allocation7 [shape = 's32[1]{0}', space=sflag, size = 0x4, scoped, tag = 'scoped memory for tpu_custom_call.1']
    #allocation8 [shape = 'u8[512]{0}', space=vmem, size = 0x400, scoped, tag = 'input window, operand 3, single buffered']
    #allocation9 [shape = 'u8[16384]{0}', space=vmem, size = 0x4000, scoped, tag = 'input window, operand 8']
    #allocation10 [shape = 's32[2]{0}', space=sflag, size = 0x8, scoped, tag = 'scoped memory for tpu_custom_call.1']
    #allocation11 [shape = 'u8[16384]{0}', space=vmem, size = 0x4000, scoped, tag = 'input window, operand 9']
    #allocation12 [shape = 'u8[8192]{0}', space=vmem, size = 0x2000, scoped, tag = 'output window, operand 0, single buffered']
    %22 = vsyncpa [#allocation4], 0
    %23 = vsyncpa [#allocation7], 0
    %24 = vsyncpa [#allocation10], 0
    %s25 = scalar_lea.sflag [#allocation10], 1
    %26 = vsyncpa %s25, 0
    %27 = vsyncpa [#allocation5], 0
    loop: start=0, step=1, limit=4
    $region2: #{tpu_custom_call.1} parent=1 // loop_pre_header
      _
    $region3: #{tpu_custom_call.1} parent=1 // loop_header
      %s29 = sphi 0, %s33
      %p30 = scmp.ge.s32.totalorder %s29, 4
      %s36 = sphi 0, %s48
      %s37 = sphi 0, %s44
      %s38 = sphi 0, %s36
      %s39 = sphi 0, %s37
      %s40 = sphi 0, %s38
      %s41 = sphi 0, %s39
      %s51 = sphi 0, %s53
      %s54 = sphi 0, %s51
      %s55 = sphi 0, %s54
      %s71 = sphi 0, %s55
      %s75 = sphi 0, %s75
      %s77 = sphi 0, %s75
      %s78 = sphi 0, %s77
      %s92 = sphi 0, %s78
      %s96 = sphi 0, %s96
      %s98 = sphi 0, %s96
      %s99 = sphi 0, %s98
      %s113 = sphi 0, %s99
      %s117 = sphi 0, %s117
      %s119 = sphi 0, %s117
      %s120 = sphi 0, %s119
      %s134 = sphi 0, %s120
      %s140 = sphi 0, %s142
      %s143 = sphi 0, %s140
      %s144 = sphi 0, %s143
      %s160 = sphi 0, %s144
      %s166 = sphi 0, %s168
      %s169 = sphi 0, %s166
      %s170 = sphi 0, %s169
      %s186 = sphi 0, %s170
      %s192 = sphi 0, %s194
      %s195 = sphi 0, %s192
      %s196 = sphi 0, %s195
      %s212 = sphi 0, %s196
      %s218 = sphi 0, %s220
      %s221 = sphi 0, %s218
      %s222 = sphi 0, %s221
      %s238 = sphi 0, %s222
      %s244 = sphi 0, %s246
      %s247 = sphi 0, %s244
      %s248 = sphi 0, %s247
      %s264 = sphi 0, %s248
      %s270 = sphi 0, %s272
      %s273 = sphi 0, %s270
      %s274 = sphi 0, %s273
      %s290 = sphi 0, %s274
      %s296 = sphi 0, %s298
      %s299 = sphi 0, %s296
      %s300 = sphi 0, %s299
      %s316 = sphi 0, %s300
      %s322 = sphi 0, %s324
      %s325 = sphi 0, %s322
      %s326 = sphi 0, %s325
      %s342 = sphi 0, %s326
      %s348 = sphi 0, %s350
      %s351 = sphi 0, %s348
      %s352 = sphi 0, %s351
      %s368 = sphi 0, %s352
      %s374 = sphi 0, %s376
      %s377 = sphi 0, %s374
      %s378 = sphi 0, %s377
      %s394 = sphi 0, %s378
      %s400 = sphi 0, %s402
      %s403 = sphi 0, %s400
      %s404 = sphi 0, %s403
      %s420 = sphi 0, %s404
      %s426 = sphi 0, %s428
      %s429 = sphi 0, %s426
      %s430 = sphi 0, %s429
      %s446 = sphi 0, %s430
      %s452 = sphi 0, %s454
      %s455 = sphi 0, %s452
      %s456 = sphi 0, %s455
      %s472 = sphi 0, %s456
      %s478 = sphi 0, %s480
      %s481 = sphi 0, %s478
      %s482 = sphi 0, %s481
      %s498 = sphi 0, %s482
    $region4: #{tpu_custom_call.1} parent=1 // loop_header_branch
      %32 = sbr.rel (%p30) target = $region8
    $region5: #{tpu_custom_call.1} parent=1 // loop_body
      %s34 = ssub.s32 %s29, 1
      %s35 = ssub.s32 %s29, 2
      %s42 = sadd.s32 1, %s37
      %p43 = scmp.ge.s32.totalorder %s42, 2
      %s44 = scalar_select %p43, 0, %s42
      %s45 = sadd.s32 1, %s36
      %s46 = scalar_select %p43, %s45, %s36
      %p47 = scmp.ge.s32.totalorder %s46, 1
      %s48 = scalar_select %p47, 0, %s46
      %s49 = ssub.s32 %s36, %s48
      %p50 = scmp.eq.s32.totalorder %s49, 0
      %s52 = sadd.s32 %s51, 1
      %s53 = scalar_select %p50, %s51, %s52
      %p56 = pneg %p50
      %p57 = scmp.eq.s32.totalorder %s29, 1
      %p58 = por %p56, %p57
      %p59 = scmp.ne.s32.totalorder %s51, %s54
      %p60 = scmp.eq.s32.totalorder %s29, 0
      %p61 = por %p59, %p60
      %p62 = scmp.ne.s32.totalorder %s51, %s54
      %p63 = scmp.eq.s32.totalorder %s34, 1
      %p64 = por %p62, %p63
      %p65 = scmp.ne.s32.totalorder %s54, %s55
      %p66 = scmp.eq.s32.totalorder %s34, 0
      %p67 = por %p65, %p66
      %p68 = scmp.ne.s32.totalorder %s54, %s55
      %p69 = scmp.eq.s32.totalorder %s35, 1
      %p70 = por %p68, %p69
      %p72 = scmp.ne.s32.totalorder %s55, %s71
      %p73 = scmp.eq.s32.totalorder %s35, 0
      %p74 = por %p72, %p73
      %s76 = sadd.s32 %s75, 1
      %p79 = scmp.eq.s32.totalorder %s29, 1
      %p80 = scmp.ne.s32.totalorder %s75, %s77
      %p81 = scmp.eq.s32.totalorder %s29, 0
      %p82 = por %p80, %p81
      %p83 = scmp.ne.s32.totalorder %s75, %s77
      %p84 = scmp.eq.s32.totalorder %s34, 1
      %p85 = por %p83, %p84
      %p86 = scmp.ne.s32.totalorder %s77, %s78
      %p87 = scmp.eq.s32.totalorder %s34, 0
      %p88 = por %p86, %p87
      %p89 = scmp.ne.s32.totalorder %s77, %s78
      %p90 = scmp.eq.s32.totalorder %s35, 1
      %p91 = por %p89, %p90
      %p93 = scmp.ne.s32.totalorder %s78, %s92
      %p94 = scmp.eq.s32.totalorder %s35, 0
      %p95 = por %p93, %p94
      %s97 = sadd.s32 %s96, 1
      %p100 = scmp.eq.s32.totalorder %s29, 1
      %p101 = scmp.ne.s32.totalorder %s96, %s98
      %p102 = scmp.eq.s32.totalorder %s29, 0
      %p103 = por %p101, %p102
      %p104 = scmp.ne.s32.totalorder %s96, %s98
      %p105 = scmp.eq.s32.totalorder %s34, 1
      %p106 = por %p104, %p105
      %p107 = scmp.ne.s32.totalorder %s98, %s99
      %p108 = scmp.eq.s32.totalorder %s34, 0
      %p109 = por %p107, %p108
      %p110 = scmp.ne.s32.totalorder %s98, %s99
      %p111 = scmp.eq.s32.totalorder %s35, 1
      %p112 = por %p110, %p111
      %p114 = scmp.ne.s32.totalorder %s99, %s113
      %p115 = scmp.eq.s32.totalorder %s35, 0
      %p116 = por %p114, %p115
      %s118 = sadd.s32 %s117, 1
      %p121 = scmp.eq.s32.totalorder %s29, 1
      %p122 = scmp.ne.s32.totalorder %s117, %s119
      %p123 = scmp.eq.s32.totalorder %s29, 0
      %p124 = por %p122, %p123
      %p125 = scmp.ne.s32.totalorder %s117, %s119
      %p126 = scmp.eq.s32.totalorder %s34, 1
      %p127 = por %p125, %p126
      %p128 = scmp.ne.s32.totalorder %s119, %s120
      %p129 = scmp.eq.s32.totalorder %s34, 0
      %p130 = por %p128, %p129
      %p131 = scmp.ne.s32.totalorder %s119, %s120
      %p132 = scmp.eq.s32.totalorder %s35, 1
      %p133 = por %p131, %p132
      %p135 = scmp.ne.s32.totalorder %s120, %s134
      %p136 = scmp.eq.s32.totalorder %s35, 0
      %p137 = por %p135, %p136
      %s138 = ssub.s32 %s36, %s48
      %p139 = scmp.eq.s32.totalorder %s138, 0
      %s141 = sadd.s32 %s140, 1
      %s142 = scalar_select %p139, %s140, %s141
      %p145 = pneg %p139
      %p146 = scmp.eq.s32.totalorder %s29, 1
      %p147 = por %p145, %p146
      %p148 = scmp.ne.s32.totalorder %s140, %s143
      %p149 = scmp.eq.s32.totalorder %s29, 0
      %p150 = por %p148, %p149
      %p151 = scmp.ne.s32.totalorder %s140, %s143
      %p152 = scmp.eq.s32.totalorder %s34, 1
      %p153 = por %p151, %p152
      %p154 = scmp.ne.s32.totalorder %s143, %s144
      %p155 = scmp.eq.s32.totalorder %s34, 0
      %p156 = por %p154, %p155
      %p157 = scmp.ne.s32.totalorder %s143, %s144
      %p158 = scmp.eq.s32.totalorder %s35, 1
      %p159 = por %p157, %p158
      %p161 = scmp.ne.s32.totalorder %s144, %s160
      %p162 = scmp.eq.s32.totalorder %s35, 0
      %p163 = por %p161, %p162
      %s164 = ssub.s32 %s37, %s44
      %p165 = scmp.eq.s32.totalorder %s164, 0
      %s167 = sadd.s32 %s166, 1
      %s168 = scalar_select %p165, %s166, %s167
      %p171 = pneg %p165
      %p172 = scmp.eq.s32.totalorder %s29, 1
      %p173 = por %p171, %p172
      %p174 = scmp.ne.s32.totalorder %s166, %s169
      %p175 = scmp.eq.s32.totalorder %s29, 0
      %p176 = por %p174, %p175
      %p177 = scmp.ne.s32.totalorder %s166, %s169
      %p178 = scmp.eq.s32.totalorder %s34, 1
      %p179 = por %p177, %p178
      %p180 = scmp.ne.s32.totalorder %s169, %s170
      %p181 = scmp.eq.s32.totalorder %s34, 0
      %p182 = por %p180, %p181
      %p183 = scmp.ne.s32.totalorder %s169, %s170
      %p184 = scmp.eq.s32.totalorder %s35, 1
      %p185 = por %p183, %p184
      %p187 = scmp.ne.s32.totalorder %s170, %s186
      %p188 = scmp.eq.s32.totalorder %s35, 0
      %p189 = por %p187, %p188
      %s190 = ssub.s32 %s37, %s44
      %p191 = scmp.eq.s32.totalorder %s190, 0
      %s193 = sadd.s32 %s192, 1
      %s194 = scalar_select %p191, %s192, %s193
      %p197 = pneg %p191
      %p198 = scmp.eq.s32.totalorder %s29, 1
      %p199 = por %p197, %p198
      %p200 = scmp.ne.s32.totalorder %s192, %s195
      %p201 = scmp.eq.s32.totalorder %s29, 0
      %p202 = por %p200, %p201
      %p203 = scmp.ne.s32.totalorder %s192, %s195
      %p204 = scmp.eq.s32.totalorder %s34, 1
      %p205 = por %p203, %p204
      %p206 = scmp.ne.s32.totalorder %s195, %s196
      %p207 = scmp.eq.s32.totalorder %s34, 0
      %p208 = por %p206, %p207
      %p209 = scmp.ne.s32.totalorder %s195, %s196
      %p210 = scmp.eq.s32.totalorder %s35, 1
      %p211 = por %p209, %p210
      %p213 = scmp.ne.s32.totalorder %s196, %s212
      %p214 = scmp.eq.s32.totalorder %s35, 0
      %p215 = por %p213, %p214
      %s216 = ssub.s32 %s37, %s44
      %p217 = scmp.eq.s32.totalorder %s216, 0
      %s219 = sadd.s32 %s218, 1
      %s220 = scalar_select %p217, %s218, %s219
      %p223 = pneg %p217
      %p224 = scmp.eq.s32.totalorder %s29, 1
      %p225 = por %p223, %p224
      %p226 = scmp.ne.s32.totalorder %s218, %s221
      %p227 = scmp.eq.s32.totalorder %s29, 0
      %p228 = por %p226, %p227
      %p229 = scmp.ne.s32.totalorder %s218, %s221
      %p230 = scmp.eq.s32.totalorder %s34, 1
      %p231 = por %p229, %p230
      %p232 = scmp.ne.s32.totalorder %s221, %s222
      %p233 = scmp.eq.s32.totalorder %s34, 0
      %p234 = por %p232, %p233
      %p235 = scmp.ne.s32.totalorder %s221, %s222
      %p236 = scmp.eq.s32.totalorder %s35, 1
      %p237 = por %p235, %p236
      %p239 = scmp.ne.s32.totalorder %s222, %s238
      %p240 = scmp.eq.s32.totalorder %s35, 0
      %p241 = por %p239, %p240
      %s242 = ssub.s32 %s37, %s44
      %p243 = scmp.eq.s32.totalorder %s242, 0
      %s245 = sadd.s32 %s244, 1
      %s246 = scalar_select %p243, %s244, %s245
      %p249 = pneg %p243
      %p250 = scmp.eq.s32.totalorder %s29, 1
      %p251 = por %p249, %p250
      %p252 = scmp.ne.s32.totalorder %s244, %s247
      %p253 = scmp.eq.s32.totalorder %s29, 0
      %p254 = por %p252, %p253
      %p255 = scmp.ne.s32.totalorder %s244, %s247
      %p256 = scmp.eq.s32.totalorder %s34, 1
      %p257 = por %p255, %p256
      %p258 = scmp.ne.s32.totalorder %s247, %s248
      %p259 = scmp.eq.s32.totalorder %s34, 0
      %p260 = por %p258, %p259
      %p261 = scmp.ne.s32.totalorder %s247, %s248
      %p262 = scmp.eq.s32.totalorder %s35, 1
      %p263 = por %p261, %p262
      %p265 = scmp.ne.s32.totalorder %s248, %s264
      %p266 = scmp.eq.s32.totalorder %s35, 0
      %p267 = por %p265, %p266
      %s268 = ssub.s32 %s37, %s44
      %p269 = scmp.eq.s32.totalorder %s268, 0
      %s271 = sadd.s32 %s270, 1
      %s272 = scalar_select %p269, %s270, %s271
      %p275 = pneg %p269
      %p276 = scmp.eq.s32.totalorder %s29, 1
      %p277 = por %p275, %p276
      %p278 = scmp.ne.s32.totalorder %s270, %s273
      %p279 = scmp.eq.s32.totalorder %s29, 0
      %p280 = por %p278, %p279
      %p281 = scmp.ne.s32.totalorder %s270, %s273
      %p282 = scmp.eq.s32.totalorder %s34, 1
      %p283 = por %p281, %p282
      %p284 = scmp.ne.s32.totalorder %s273, %s274
      %p285 = scmp.eq.s32.totalorder %s34, 0
      %p286 = por %p284, %p285
      %p287 = scmp.ne.s32.totalorder %s273, %s274
      %p288 = scmp.eq.s32.totalorder %s35, 1
      %p289 = por %p287, %p288
      %p291 = scmp.ne.s32.totalorder %s274, %s290
      %p292 = scmp.eq.s32.totalorder %s35, 0
      %p293 = por %p291, %p292
      %s294 = ssub.s32 %s37, %s44
      %p295 = scmp.eq.s32.totalorder %s294, 0
      %s297 = sadd.s32 %s296, 1
      %s298 = scalar_select %p295, %s296, %s297
      %p301 = pneg %p295
      %p302 = scmp.eq.s32.totalorder %s29, 1
      %p303 = por %p301, %p302
      %p304 = scmp.ne.s32.totalorder %s296, %s299
      %p305 = scmp.eq.s32.totalorder %s29, 0
      %p306 = por %p304, %p305
      %p307 = scmp.ne.s32.totalorder %s296, %s299
      %p308 = scmp.eq.s32.totalorder %s34, 1
      %p309 = por %p307, %p308
      %p310 = scmp.ne.s32.totalorder %s299, %s300
      %p311 = scmp.eq.s32.totalorder %s34, 0
      %p312 = por %p310, %p311
      %p313 = scmp.ne.s32.totalorder %s299, %s300
      %p314 = scmp.eq.s32.totalorder %s35, 1
      %p315 = por %p313, %p314
      %p317 = scmp.ne.s32.totalorder %s300, %s316
      %p318 = scmp.eq.s32.totalorder %s35, 0
      %p319 = por %p317, %p318
      %s320 = ssub.s32 %s37, %s44
      %p321 = scmp.eq.s32.totalorder %s320, 0
      %s323 = sadd.s32 %s322, 1
      %s324 = scalar_select %p321, %s322, %s323
      %p327 = pneg %p321
      %p328 = scmp.eq.s32.totalorder %s29, 1
      %p329 = por %p327, %p328
      %p330 = scmp.ne.s32.totalorder %s322, %s325
      %p331 = scmp.eq.s32.totalorder %s29, 0
      %p332 = por %p330, %p331
      %p333 = scmp.ne.s32.totalorder %s322, %s325
      %p334 = scmp.eq.s32.totalorder %s34, 1
      %p335 = por %p333, %p334
      %p336 = scmp.ne.s32.totalorder %s325, %s326
      %p337 = scmp.eq.s32.totalorder %s34, 0
      %p338 = por %p336, %p337
      %p339 = scmp.ne.s32.totalorder %s325, %s326
      %p340 = scmp.eq.s32.totalorder %s35, 1
      %p341 = por %p339, %p340
      %p343 = scmp.ne.s32.totalorder %s326, %s342
      %p344 = scmp.eq.s32.totalorder %s35, 0
      %p345 = por %p343, %p344
      %s346 = ssub.s32 %s37, %s44
      %p347 = scmp.eq.s32.totalorder %s346, 0
      %s349 = sadd.s32 %s348, 1
      %s350 = scalar_select %p347, %s348, %s349
      %p353 = pneg %p347
      %p354 = scmp.eq.s32.totalorder %s29, 1
      %p355 = por %p353, %p354
      %p356 = scmp.ne.s32.totalorder %s348, %s351
      %p357 = scmp.eq.s32.totalorder %s29, 0
      %p358 = por %p356, %p357
      %p359 = scmp.ne.s32.totalorder %s348, %s351
      %p360 = scmp.eq.s32.totalorder %s34, 1
      %p361 = por %p359, %p360
      %p362 = scmp.ne.s32.totalorder %s351, %s352
      %p363 = scmp.eq.s32.totalorder %s34, 0
      %p364 = por %p362, %p363
      %p365 = scmp.ne.s32.totalorder %s351, %s352
      %p366 = scmp.eq.s32.totalorder %s35, 1
      %p367 = por %p365, %p366
      %p369 = scmp.ne.s32.totalorder %s352, %s368
      %p370 = scmp.eq.s32.totalorder %s35, 0
      %p371 = por %p369, %p370
      %s372 = ssub.s32 %s37, %s44
      %p373 = scmp.eq.s32.totalorder %s372, 0
      %s375 = sadd.s32 %s374, 1
      %s376 = scalar_select %p373, %s374, %s375
      %p379 = pneg %p373
      %p380 = scmp.eq.s32.totalorder %s29, 1
      %p381 = por %p379, %p380
      %p382 = scmp.ne.s32.totalorder %s374, %s377
      %p383 = scmp.eq.s32.totalorder %s29, 0
      %p384 = por %p382, %p383
      %p385 = scmp.ne.s32.totalorder %s374, %s377
      %p386 = scmp.eq.s32.totalorder %s34, 1
      %p387 = por %p385, %p386
      %p388 = scmp.ne.s32.totalorder %s377, %s378
      %p389 = scmp.eq.s32.totalorder %s34, 0
      %p390 = por %p388, %p389
      %p391 = scmp.ne.s32.totalorder %s377, %s378
      %p392 = scmp.eq.s32.totalorder %s35, 1
      %p393 = por %p391, %p392
      %p395 = scmp.ne.s32.totalorder %s378, %s394
      %p396 = scmp.eq.s32.totalorder %s35, 0
      %p397 = por %p395, %p396
      %s398 = ssub.s32 %s37, %s44
      %p399 = scmp.eq.s32.totalorder %s398, 0
      %s401 = sadd.s32 %s400, 1
      %s402 = scalar_select %p399, %s400, %s401
      %p405 = pneg %p399
      %p406 = scmp.eq.s32.totalorder %s29, 1
      %p407 = por %p405, %p406
      %p408 = scmp.ne.s32.totalorder %s400, %s403
      %p409 = scmp.eq.s32.totalorder %s29, 0
      %p410 = por %p408, %p409
      %p411 = scmp.ne.s32.totalorder %s400, %s403
      %p412 = scmp.eq.s32.totalorder %s34, 1
      %p413 = por %p411, %p412
      %p414 = scmp.ne.s32.totalorder %s403, %s404
      %p415 = scmp.eq.s32.totalorder %s34, 0
      %p416 = por %p414, %p415
      %p417 = scmp.ne.s32.totalorder %s403, %s404
      %p418 = scmp.eq.s32.totalorder %s35, 1
      %p419 = por %p417, %p418
      %p421 = scmp.ne.s32.totalorder %s404, %s420
      %p422 = scmp.eq.s32.totalorder %s35, 0
      %p423 = por %p421, %p422
      %s424 = ssub.s32 %s37, %s44
      %p425 = scmp.eq.s32.totalorder %s424, 0
      %s427 = sadd.s32 %s426, 1
      %s428 = scalar_select %p425, %s426, %s427
      %p431 = pneg %p425
      %p432 = scmp.eq.s32.totalorder %s29, 1
      %p433 = por %p431, %p432
      %p434 = scmp.ne.s32.totalorder %s426, %s429
      %p435 = scmp.eq.s32.totalorder %s29, 0
      %p436 = por %p434, %p435
      %p437 = scmp.ne.s32.totalorder %s426, %s429
      %p438 = scmp.eq.s32.totalorder %s34, 1
      %p439 = por %p437, %p438
      %p440 = scmp.ne.s32.totalorder %s429, %s430
      %p441 = scmp.eq.s32.totalorder %s34, 0
      %p442 = por %p440, %p441
      %p443 = scmp.ne.s32.totalorder %s429, %s430
      %p444 = scmp.eq.s32.totalorder %s35, 1
      %p445 = por %p443, %p444
      %p447 = scmp.ne.s32.totalorder %s430, %s446
      %p448 = scmp.eq.s32.totalorder %s35, 0
      %p449 = por %p447, %p448
      %s450 = ssub.s32 %s37, %s44
      %p451 = scmp.eq.s32.totalorder %s450, 0
      %s453 = sadd.s32 %s452, 1
      %s454 = scalar_select %p451, %s452, %s453
      %p457 = pneg %p451
      %p458 = scmp.eq.s32.totalorder %s29, 1
      %p459 = por %p457, %p458
      %p460 = scmp.ne.s32.totalorder %s452, %s455
      %p461 = scmp.eq.s32.totalorder %s29, 0
      %p462 = por %p460, %p461
      %p463 = scmp.ne.s32.totalorder %s452, %s455
      %p464 = scmp.eq.s32.totalorder %s34, 1
      %p465 = por %p463, %p464
      %p466 = scmp.ne.s32.totalorder %s455, %s456
      %p467 = scmp.eq.s32.totalorder %s34, 0
      %p468 = por %p466, %p467
      %p469 = scmp.ne.s32.totalorder %s455, %s456
      %p470 = scmp.eq.s32.totalorder %s35, 1
      %p471 = por %p469, %p470
      %p473 = scmp.ne.s32.totalorder %s456, %s472
      %p474 = scmp.eq.s32.totalorder %s35, 0
      %p475 = por %p473, %p474
      %s476 = ssub.s32 %s36, %s48
      %p477 = scmp.eq.s32.totalorder %s476, 0
      %s479 = sadd.s32 %s478, 1
      %s480 = scalar_select %p477, %s478, %s479
      %p483 = pneg %p477
      %p484 = scmp.eq.s32.totalorder %s29, 1
      %p485 = por %p483, %p484
      %p486 = scmp.ne.s32.totalorder %s478, %s481
      %p487 = scmp.eq.s32.totalorder %s29, 0
      %p488 = por %p486, %p487
      %p489 = scmp.ne.s32.totalorder %s478, %s481
      %p490 = scmp.eq.s32.totalorder %s34, 1
      %p491 = por %p489, %p490
      %p492 = scmp.ne.s32.totalorder %s481, %s482
      %p493 = scmp.eq.s32.totalorder %s34, 0
      %p494 = por %p492, %p493
      %p495 = scmp.ne.s32.totalorder %s481, %s482
      %p496 = scmp.eq.s32.totalorder %s35, 1
      %p497 = por %p495, %p496
      %p499 = scmp.ne.s32.totalorder %s482, %s498
      %p500 = scmp.eq.s32.totalorder %s35, 0
      %p501 = por %p499, %p500
      %p502 = scmp.le.s32.totalorder 1, %s29
      %p503 = scmp.lt.s32.totalorder %s29, 3
      %p504 = pnand %p502, %p503
      %p505 = pneg %p504
      // Predicated region
      $region9: #{tpu_custom_call.1} parent=5 // pred_check
        _
      $region10: #{tpu_custom_call.1} parent=5 // pred_check_branch
        %507 = sbr.rel (%p504) target = $region12
      $region11: #{tpu_custom_call.1} parent=5 // pred_region
        %s508 = ssub.s32 %s29, 1
        // Predicated region
        $region13: #{tpu_custom_call.1} parent=11 // pred_check
          %p509 = pneg %p67
        $region14: #{tpu_custom_call.1} parent=11 // pred_check_branch
          %511 = sbr.rel (%p509) target = $region16
        $region15: #{tpu_custom_call.1} parent=11 // pred_region
          %s512 = smul.u32 2, %s38
          %514 = vsyncadd [#allocation4], 0
          %s515 = smul.addr %s512, 8
          %s516 = scalar_lea.hbm %s0, %s515
          %s517 = sshll.u32 %s516, 4
          %s518 = int_to_ptr.hbm [resolvable:$true] %s517
          %s519 = sshll.u32 [#allocation3], 4
          %s520 = int_to_ptr.vmem [resolvable:$true] %s519
          %525 = dma.hbm_to_vmem [thread:$0]  %s518, 256, %s520, [#allocation4], 128, 128, 8
        $region16: #{tpu_custom_call.1} parent=11 // pred_fallthru
          _
        // Predicated region
        $region17: #{tpu_custom_call.1} parent=11 // pred_check
          %p526 = pneg %p88
        $region18: #{tpu_custom_call.1} parent=11 // pred_check_branch
          %528 = sbr.rel (%p526) target = $region20
        $region19: #{tpu_custom_call.1} parent=11 // pred_region
          %530 = vsyncadd [#allocation7], 0
          %s532 = sshll.u32 %s1, 4
          %s533 = int_to_ptr.hbm [resolvable:$true] %s532
          %s534 = sshll.u32 [#allocation6], 4
          %s535 = int_to_ptr.vmem [resolvable:$true] %s534
          %537 = dma.hbm_to_vmem [thread:$0]  %s533, 128, %s535, [#allocation7]
        $region20: #{tpu_custom_call.1} parent=11 // pred_fallthru
          _
        // Predicated region
        $region21: #{tpu_custom_call.1} parent=11 // pred_check
          %p538 = pneg %p109
        $region22: #{tpu_custom_call.1} parent=11 // pred_check_branch
          %540 = sbr.rel (%p538) target = $region24
        $region23: #{tpu_custom_call.1} parent=11 // pred_region
          _
        $region24: #{tpu_custom_call.1} parent=11 // pred_fallthru
          _
        // Predicated region
        $region25: #{tpu_custom_call.1} parent=11 // pred_check
          %p541 = pneg %p130
        $region26: #{tpu_custom_call.1} parent=11 // pred_check_branch
          %543 = sbr.rel (%p541) target = $region28
        $region27: #{tpu_custom_call.1} parent=11 // pred_region
          %545 = vsyncadd [#allocation7], 0
          %s547 = sshll.u32 %s3, 4
          %s548 = int_to_ptr.hbm [resolvable:$true] %s547
          %s549 = sshll.u32 [#allocation8], 4
          %s550 = int_to_ptr.vmem [resolvable:$true] %s549
          %552 = dma.hbm_to_vmem [thread:$0]  %s548, 16, %s550, [#allocation7]
        $region28: #{tpu_custom_call.1} parent=11 // pred_fallthru
          _
        // Predicated region
        $region29: #{tpu_custom_call.1} parent=11 // pred_check
          %p553 = pneg %p156
        $region30: #{tpu_custom_call.1} parent=11 // pred_check_branch
          %555 = sbr.rel (%p553) target = $region32
        $region31: #{tpu_custom_call.1} parent=11 // pred_region
          %s556 = smul.u32 2, %s38
          %p557 = scmp.lt.s32.totalorder %s556, 1
          %s558 = scalar_select %p557, %s556, 1
          %s559 = scalar_lea.vmem %s4, %s558
          %s560 = smul.u32 2, %s38
        $region32: #{tpu_custom_call.1} parent=11 // pred_fallthru
          _
      $region12: #{tpu_custom_call.1} parent=5 // pred_fallthru
        _
      %p561 = scmp.lt.s32.totalorder %s29, 2
      // Predicated region
      $region33: #{tpu_custom_call.1} parent=5 // pred_check
        %p562 = pneg %p561
      $region34: #{tpu_custom_call.1} parent=5 // pred_check_branch
        %564 = sbr.rel (%p562) target = $region36
      $region35: #{tpu_custom_call.1} parent=5 // pred_region
        // Predicated region
        $region37: #{tpu_custom_call.1} parent=35 // pred_check
          %p565 = pneg %p176
        $region38: #{tpu_custom_call.1} parent=35 // pred_check_branch
          %567 = sbr.rel (%p565) target = $region40
        $region39: #{tpu_custom_call.1} parent=35 // pred_region
          %p568 = scmp.lt.s32.totalorder %s37, 1
          %s569 = scalar_select %p568, %s37, 1
          %s570 = smul.addr %s569, 4
          %s571 = smul.addr %s570, 4
          %s572 = scalar_lea.vmem %s5, %s571
        $region40: #{tpu_custom_call.1} parent=35 // pred_fallthru
          _
        // Predicated region
        $region41: #{tpu_custom_call.1} parent=35 // pred_check
          %p573 = pneg %p202
        $region42: #{tpu_custom_call.1} parent=35 // pred_check_branch
          %575 = sbr.rel (%p573) target = $region44
        $region43: #{tpu_custom_call.1} parent=35 // pred_region
          %p576 = scmp.lt.s32.totalorder %s37, 1
          %s577 = scalar_select %p576, %s37, 1
          %s578 = smul.addr %s577, 4
          %s579 = smul.addr %s578, 4
          %s580 = scalar_lea.vmem %s6, %s579
        $region44: #{tpu_custom_call.1} parent=35 // pred_fallthru
          _
        // Predicated region
        $region45: #{tpu_custom_call.1} parent=35 // pred_check
          %p581 = pneg %p228
        $region46: #{tpu_custom_call.1} parent=35 // pred_check_branch
          %583 = sbr.rel (%p581) target = $region48
        $region47: #{tpu_custom_call.1} parent=35 // pred_region
          %p584 = scmp.lt.s32.totalorder %s37, 1
          %s585 = scalar_select %p584, %s37, 1
          %s586 = smul.addr %s585, 4
          %s587 = smul.addr %s586, 4
          %s588 = scalar_lea.vmem %s7, %s587
        $region48: #{tpu_custom_call.1} parent=35 // pred_fallthru
          _
        // Predicated region
        $region49: #{tpu_custom_call.1} parent=35 // pred_check
          %p589 = pneg %p254
        $region50: #{tpu_custom_call.1} parent=35 // pred_check_branch
          %591 = sbr.rel (%p589) target = $region52
        $region51: #{tpu_custom_call.1} parent=35 // pred_region
          %s592 = sand.u32 %s29, 1
          %s593 = scalar_lea.sflag [#allocation10], %s592
          %s594 = sand.u32 %s244, 1
          %s595 = smul.addr %s594, 16
          %s596 = scalar_lea.vmem [#allocation9], %s595
          %598 = vsyncadd %s593, 0
          %s599 = smul.addr %s37, 4
          %s600 = smul.addr %s599, 4
          %s601 = scalar_lea.hbm %s8, %s600
          %s602 = sshll.u32 %s601, 4
          %s603 = int_to_ptr.hbm [resolvable:$true] %s602
          %s604 = sshll.u32 %s596, 4
          %s605 = int_to_ptr.vmem [resolvable:$true] %s604
          %610 = dma.hbm_to_vmem [thread:$0]  %s603, 256, %s605, %s593, 64, 64, 4
        $region52: #{tpu_custom_call.1} parent=35 // pred_fallthru
          _
        // Predicated region
        $region53: #{tpu_custom_call.1} parent=35 // pred_check
          %p611 = pneg %p280
        $region54: #{tpu_custom_call.1} parent=35 // pred_check_branch
          %613 = sbr.rel (%p611) target = $region56
        $region55: #{tpu_custom_call.1} parent=35 // pred_region
          %s614 = sand.u32 %s29, 1
          %s615 = scalar_lea.sflag [#allocation10], %s614
          %s616 = sand.u32 %s270, 1
          %s617 = smul.addr %s616, 16
          %s618 = scalar_lea.vmem [#allocation11], %s617
          %620 = vsyncadd %s615, 0
          %s621 = smul.addr %s37, 4
          %s622 = smul.addr %s621, 4
          %s623 = scalar_lea.hbm %s9, %s622
          %s624 = sshll.u32 %s623, 4
          %s625 = int_to_ptr.hbm [resolvable:$true] %s624
          %s626 = sshll.u32 %s618, 4
          %s627 = int_to_ptr.vmem [resolvable:$true] %s626
          %632 = dma.hbm_to_vmem [thread:$0]  %s625, 256, %s627, %s615, 64, 64, 4
        $region56: #{tpu_custom_call.1} parent=35 // pred_fallthru
          _
        // Predicated region
        $region57: #{tpu_custom_call.1} parent=35 // pred_check
          %p633 = pneg %p306
        $region58: #{tpu_custom_call.1} parent=35 // pred_check_branch
          %635 = sbr.rel (%p633) target = $region60
        $region59: #{tpu_custom_call.1} parent=35 // pred_region
          %p636 = scmp.lt.s32.totalorder %s37, 1
          %s637 = scalar_select %p636, %s37, 1
          %s638 = scalar_lea.vmem %s10, %s637
        $region60: #{tpu_custom_call.1} parent=35 // pred_fallthru
          _
        // Predicated region
        $region61: #{tpu_custom_call.1} parent=35 // pred_check
          %p639 = pneg %p332
        $region62: #{tpu_custom_call.1} parent=35 // pred_check_branch
          %641 = sbr.rel (%p639) target = $region64
        $region63: #{tpu_custom_call.1} parent=35 // pred_region
          %p642 = scmp.lt.s32.totalorder %s37, 1
          %s643 = scalar_select %p642, %s37, 1
          %s644 = smul.addr %s643, 8
          %s645 = smul.addr %s644, 4
          %s646 = scalar_lea.vmem %s11, %s645
        $region64: #{tpu_custom_call.1} parent=35 // pred_fallthru
          _
        // Predicated region
        $region65: #{tpu_custom_call.1} parent=35 // pred_check
          %p647 = pneg %p358
        $region66: #{tpu_custom_call.1} parent=35 // pred_check_branch
          %649 = sbr.rel (%p647) target = $region68
        $region67: #{tpu_custom_call.1} parent=35 // pred_region
          %p650 = scmp.lt.s32.totalorder %s37, 1
          %s651 = scalar_select %p650, %s37, 1
          %s652 = scalar_lea.vmem %s12, %s651
        $region68: #{tpu_custom_call.1} parent=35 // pred_fallthru
          _
        // Predicated region
        $region69: #{tpu_custom_call.1} parent=35 // pred_check
          %p653 = pneg %p384
        $region70: #{tpu_custom_call.1} parent=35 // pred_check_branch
          %655 = sbr.rel (%p653) target = $region72
        $region71: #{tpu_custom_call.1} parent=35 // pred_region
          %p656 = scmp.lt.s32.totalorder %s37, 1
          %s657 = scalar_select %p656, %s37, 1
          %s658 = scalar_lea.vmem %s13, %s657
        $region72: #{tpu_custom_call.1} parent=35 // pred_fallthru
          _
        // Predicated region
        $region73: #{tpu_custom_call.1} parent=35 // pred_check
          %p659 = pneg %p410
        $region74: #{tpu_custom_call.1} parent=35 // pred_check_branch
          %661 = sbr.rel (%p659) target = $region76
        $region75: #{tpu_custom_call.1} parent=35 // pred_region
          %p662 = scmp.lt.s32.totalorder %s37, 1
          %s663 = scalar_select %p662, %s37, 1
          %s664 = scalar_lea.vmem %s14, %s663
        $region76: #{tpu_custom_call.1} parent=35 // pred_fallthru
          _
        // Predicated region
        $region77: #{tpu_custom_call.1} parent=35 // pred_check
          %p665 = pneg %p436
        $region78: #{tpu_custom_call.1} parent=35 // pred_check_branch
          %667 = sbr.rel (%p665) target = $region80
        $region79: #{tpu_custom_call.1} parent=35 // pred_region
          %p668 = scmp.lt.s32.totalorder %s37, 1
          %s669 = scalar_select %p668, %s37, 1
          %s670 = scalar_lea.vmem %s15, %s669
        $region80: #{tpu_custom_call.1} parent=35 // pred_fallthru
          _
        // Predicated region
        $region81: #{tpu_custom_call.1} parent=35 // pred_check
          %p671 = pneg %p462
        $region82: #{tpu_custom_call.1} parent=35 // pred_check_branch
          %673 = sbr.rel (%p671) target = $region84
        $region83: #{tpu_custom_call.1} parent=35 // pred_region
          %p674 = scmp.lt.s32.totalorder %s37, 1
          %s675 = scalar_select %p674, %s37, 1
          %s676 = scalar_lea.vmem %s16, %s675
        $region84: #{tpu_custom_call.1} parent=35 // pred_fallthru
          _
      $region36: #{tpu_custom_call.1} parent=5 // pred_fallthru
        _
      %p677 = scmp.le.s32.totalorder 1, %s29
      %p678 = scmp.lt.s32.totalorder %s29, 3
      %p679 = pnand %p677, %p678
      %p680 = pneg %p679
      // Predicated region
      $region85: #{tpu_custom_call.1} parent=5 // pred_check
        _
      $region86: #{tpu_custom_call.1} parent=5 // pred_check_branch
        %682 = sbr.rel (%p679) target = $region88
      $region87: #{tpu_custom_call.1} parent=5 // pred_region
        %s683 = ssub.s32 %s29, 1
        // Predicated region
        $region89: #{tpu_custom_call.1} parent=87 // pred_check
          %p684 = pneg %p67
        $region90: #{tpu_custom_call.1} parent=87 // pred_check_branch
          %686 = sbr.rel (%p684) target = $region92
        $region91: #{tpu_custom_call.1} parent=87 // pred_region
          %688 = dma.done [#allocation4], 256
        $region92: #{tpu_custom_call.1} parent=87 // pred_fallthru
          _
        // Predicated region
        $region93: #{tpu_custom_call.1} parent=87 // pred_check
          %p689 = pneg %p88
        $region94: #{tpu_custom_call.1} parent=87 // pred_check_branch
          %691 = sbr.rel (%p689) target = $region96
        $region95: #{tpu_custom_call.1} parent=87 // pred_region
          %693 = dma.done [#allocation7], 128
        $region96: #{tpu_custom_call.1} parent=87 // pred_fallthru
          _
        // Predicated region
        $region97: #{tpu_custom_call.1} parent=87 // pred_check
          %p694 = pneg %p130
        $region98: #{tpu_custom_call.1} parent=87 // pred_check_branch
          %696 = sbr.rel (%p694) target = $region100
        $region99: #{tpu_custom_call.1} parent=87 // pred_region
          %698 = dma.done [#allocation7], 16
        $region100: #{tpu_custom_call.1} parent=87 // pred_fallthru
          _
        %s699 = sand.u32 %s34, 1
        %s700 = scalar_lea.sflag [#allocation10], %s699
        %s701 = sand.u32 %s247, 1
        %s702 = smul.addr %s701, 16
        %s703 = scalar_lea.vmem [#allocation9], %s702
        // Predicated region
        $region101: #{tpu_custom_call.1} parent=87 // pred_check
          %p704 = pneg %p260
        $region102: #{tpu_custom_call.1} parent=87 // pred_check_branch
          %706 = sbr.rel (%p704) target = $region104
        $region103: #{tpu_custom_call.1} parent=87 // pred_region
          %708 = dma.done %s700, 256
        $region104: #{tpu_custom_call.1} parent=87 // pred_fallthru
          _
        %s709 = sand.u32 %s34, 1
        %s710 = scalar_lea.sflag [#allocation10], %s709
        %s711 = sand.u32 %s273, 1
        %s712 = smul.addr %s711, 16
        %s713 = scalar_lea.vmem [#allocation11], %s712
        // Predicated region
        $region105: #{tpu_custom_call.1} parent=87 // pred_check
          %p714 = pneg %p286
        $region106: #{tpu_custom_call.1} parent=87 // pred_check_branch
          %716 = sbr.rel (%p714) target = $region108
        $region107: #{tpu_custom_call.1} parent=87 // pred_region
          %718 = dma.done %s710, 256
        $region108: #{tpu_custom_call.1} parent=87 // pred_fallthru
          _
        %p719 = pneg %p67
        %p720 = pneg %p64
        %p721 = pneg %p88
        %p722 = pneg %p85
        %p723 = pneg %p109
        %p724 = pneg %p106
        %p725 = pneg %p130
        %p726 = pneg %p127
        %s727 = smul.u32 2, %s38
        %p728 = scmp.lt.s32.totalorder %s727, 1
        %s729 = scalar_select %p728, %s727, 1
        %s730 = scalar_lea.vmem %s4, %s729
        %p731 = pneg %p156
        %p732 = pneg %p153
        %p733 = scmp.lt.s32.totalorder %s39, 1
        %s734 = scalar_select %p733, %s39, 1
        %s735 = smul.addr %s734, 4
        %s736 = smul.addr %s735, 4
        %s737 = scalar_lea.vmem %s5, %s736
        %p738 = pneg %p182
        %p739 = pneg %p179
        %p740 = scmp.lt.s32.totalorder %s39, 1
        %s741 = scalar_select %p740, %s39, 1
        %s742 = smul.addr %s741, 4
        %s743 = smul.addr %s742, 4
        %s744 = scalar_lea.vmem %s6, %s743
        %p745 = pneg %p208
        %p746 = pneg %p205
        %p747 = scmp.lt.s32.totalorder %s39, 1
        %s748 = scalar_select %p747, %s39, 1
        %s749 = smul.addr %s748, 4
        %s750 = smul.addr %s749, 4
        %s751 = scalar_lea.vmem %s7, %s750
        %p752 = pneg %p234
        %p753 = pneg %p231
        %s754 = sand.u32 %s34, 1
        %s755 = scalar_lea.sflag [#allocation10], %s754
        %s756 = sand.u32 %s247, 1
        %s757 = smul.addr %s756, 16
        %s758 = scalar_lea.vmem [#allocation9], %s757
        %p759 = pneg %p260
        %p760 = pneg %p257
        %s761 = sand.u32 %s34, 1
        %s762 = scalar_lea.sflag [#allocation10], %s761
        %s763 = sand.u32 %s273, 1
        %s764 = smul.addr %s763, 16
        %s765 = scalar_lea.vmem [#allocation11], %s764
        %p766 = pneg %p286
        %p767 = pneg %p283
        %p768 = scmp.lt.s32.totalorder %s39, 1
        %s769 = scalar_select %p768, %s39, 1
        %s770 = scalar_lea.vmem %s10, %s769
        %p771 = pneg %p312
        %p772 = pneg %p309
        %p773 = scmp.lt.s32.totalorder %s39, 1
        %s774 = scalar_select %p773, %s39, 1
        %s775 = smul.addr %s774, 8
        %s776 = smul.addr %s775, 4
        %s777 = scalar_lea.vmem %s11, %s776
        %p778 = pneg %p338
        %p779 = pneg %p335
        %p780 = scmp.lt.s32.totalorder %s39, 1
        %s781 = scalar_select %p780, %s39, 1
        %s782 = scalar_lea.vmem %s12, %s781
        %p783 = pneg %p364
        %p784 = pneg %p361
        %p785 = scmp.lt.s32.totalorder %s39, 1
        %s786 = scalar_select %p785, %s39, 1
        %s787 = scalar_lea.vmem %s13, %s786
        %p788 = pneg %p390
        %p789 = pneg %p387
        %p790 = scmp.lt.s32.totalorder %s39, 1
        %s791 = scalar_select %p790, %s39, 1
        %s792 = scalar_lea.vmem %s14, %s791
        %p793 = pneg %p416
        %p794 = pneg %p413
        %p795 = scmp.lt.s32.totalorder %s39, 1
        %s796 = scalar_select %p795, %s39, 1
        %s797 = scalar_lea.vmem %s15, %s796
        %p798 = pneg %p442
        %p799 = pneg %p439
        %p800 = scmp.lt.s32.totalorder %s39, 1
        %s801 = scalar_select %p800, %s39, 1
        %s802 = scalar_lea.vmem %s16, %s801
        %p803 = pneg %p468
        %p804 = pneg %p465
        %p805 = pneg %p494
        %p806 = pneg %p491
        %s807 = smul.u32 2, %s38
        %s808 = smul.u32 2, %s38
        %p809 = scmp.lt.s32.totalorder %s808, 1
        %s810 = scalar_select %p809, %s808, 1
        %s811 = scalar_lea.vmem %s4, %s810
        %s812 = smul.u32 2, %s38
        %p813 = scmp.lt.s32.totalorder %s39, 1
        %s814 = scalar_select %p813, %s39, 1
        %s815 = smul.addr %s814, 4
        %s816 = smul.addr %s815, 4
        %s817 = scalar_lea.vmem %s5, %s816
        %p818 = scmp.lt.s32.totalorder %s39, 1
        %s819 = scalar_select %p818, %s39, 1
        %s820 = smul.addr %s819, 4
        %s821 = smul.addr %s820, 4
        %s822 = scalar_lea.vmem %s6, %s821
        %p823 = scmp.lt.s32.totalorder %s39, 1
        %s824 = scalar_select %p823, %s39, 1
        %s825 = smul.addr %s824, 4
        %s826 = smul.addr %s825, 4
        %s827 = scalar_lea.vmem %s7, %s826
        %p828 = scmp.lt.s32.totalorder %s39, 1
        %s829 = scalar_select %p828, %s39, 1
        %s830 = scalar_lea.vmem %s10, %s829
        %p831 = scmp.lt.s32.totalorder %s39, 1
        %s832 = scalar_select %p831, %s39, 1
        %s833 = smul.addr %s832, 8
        %s834 = smul.addr %s833, 4
        %s835 = scalar_lea.vmem %s11, %s834
        %p836 = scmp.lt.s32.totalorder %s39, 1
        %s837 = scalar_select %p836, %s39, 1
        %s838 = scalar_lea.vmem %s12, %s837
        %p839 = scmp.lt.s32.totalorder %s39, 1
        %s840 = scalar_select %p839, %s39, 1
        %s841 = scalar_lea.vmem %s13, %s840
        %p842 = scmp.lt.s32.totalorder %s39, 1
        %s843 = scalar_select %p842, %s39, 1
        %s844 = scalar_lea.vmem %s14, %s843
        %p845 = scmp.lt.s32.totalorder %s39, 1
        %s846 = scalar_select %p845, %s39, 1
        %s847 = scalar_lea.vmem %s15, %s846
        %p848 = scmp.lt.s32.totalorder %s39, 1
        %s849 = scalar_select %p848, %s39, 1
        %s850 = scalar_lea.vmem %s16, %s849
        %s851 = smul.u32 2, %s38
        %p853 = scmp.eq.s32.totalorder %s39, 0
        // Predicated region
        $region109: #{tpu_custom_call.1} parent=87 // pred_check
          %p854 = pneg %p853
        $region110: #{tpu_custom_call.1} parent=87 // pred_check_branch
          %856 = sbr.rel (%p854) target = $region112
        $region111: #{tpu_custom_call.1} parent=87 // pred_region
          %v857 = vld [vmem:[#allocation3] sm:$0xff]
          %s858 = scalar_lea.vmem [#allocation3], 8
          %v859 = vld [vmem:[%s858] sm:$0xff]
          %v860 = vmul.f32 %v857, 5.656854
          %v861 = vmul.f32 %v859, 5.656854
          %v862 = vld [vmem:[#allocation6] sm:$0xff]
          %v863 = vadd.f32 %v860, %v862
          %v864 = vadd.f32 %v861, %v862
          %v865 = vld [vmem:[%s2] sm:$0x1]
          %v866 = vld [vmem:[#allocation8] sm:$0x1]
          %vm867 = vcmask 261120
          %v868 = vsel %vm867, %v863, 0.0
          %869 = vadd.xlane.f32.xlu0 %v868
          %v870 = vpop.xlane.xlu0 %869
          %v871 = vsel %vm867, %v864, 0.0
          %872 = vadd.xlane.f32.xlu0 %v871
          %v873 = vpop.xlane.xlu0 %872
          %v874 = vrcp.pop 32.0
          %v875 = vmul.f32 32.0, %v874
          %v876 = vsub.f32 1.0, %v875
          %v877 = vmul.f32 %v874, %v876
          %v878 = vadd.f32 %v874, %v877
          %vm879 = vweird.f32 %v874
          %v880 = vsel %vm879, %v874, %v878
          %v881 = vmul.f32 %v870, %v880
          %v882 = vmul.f32 %v873, %v880
          %v883 = vsub.f32 %v863, %v881
          %v884 = vsub.f32 %v864, %v882
          %v885 = vmul.f32 %v883, %v883
          %v886 = vmul.f32 %v884, %v884
          %v887 = vsel %vm867, %v885, 0.0
          %888 = vadd.xlane.f32.xlu0 %v887
          %v889 = vpop.xlane.xlu0 %888
          %v890 = vsel %vm867, %v886, 0.0
          %891 = vadd.xlane.f32.xlu0 %v890
          %v892 = vpop.xlane.xlu0 %891
          %v893 = vmul.f32 %v889, %v880
          %v894 = vmul.f32 %v892, %v880
          %v895 = vadd.f32 %v893, 1e-06
          %v896 = vadd.f32 %v894, 1e-06
          %v897 = vrsqrt.pop %v895
          %v898 = vmul.f32 %v897, %v895
          %v899 = vmul.f32 %v898, %v897
          %v900 = vmul.f32 0.5, %v899
          %v901 = vsub.f32 1.5, %v900
          %v902 = vmul.f32 %v897, %v901
          %vm903 = vweird.f32 %v895
          %vm904 = vweird.f32 %v897
          %vm905 = vmor %vm903, %vm904
          %v906 = vsel %vm905, %v897, %v902
          %v907 = vrsqrt.pop %v896
          %v908 = vmul.f32 %v907, %v896
          %v909 = vmul.f32 %v908, %v907
          %v910 = vmul.f32 0.5, %v909
          %v911 = vsub.f32 1.5, %v910
          %v912 = vmul.f32 %v907, %v911
          %vm913 = vweird.f32 %v896
          %vm914 = vweird.f32 %v907
          %vm915 = vmor %vm913, %vm914
          %v916 = vsel %vm915, %v907, %v912
          %v917 = vmul.f32 %v883, %v906
          %v918 = vmul.f32 %v884, %v916
          %v920 = vperm.slane %v865, 0
          %v922 = vmul.f32 %v917, %v920
          %v923 = vmul.f32 %v918, %v920
          %v925 = vperm.slane %v866, 0
          %v927 = vadd.f32 %v922, %v925
          %v928 = vadd.f32 %v923, %v925
          %929 = vst.msk [vmem:[#allocation2] sm:$0xff] %vm867, %v927
          %930 = vst.msk [vmem:[#allocation2 + $0x8] sm:$0xff] %vm867, %v928
        $region112: #{tpu_custom_call.1} parent=87 // pred_fallthru
          _
        %v931 = vld [vmem:[#allocation2] sm:$0xff]
        %v932 = vld [vmem:[#allocation2 + $0x8] sm:$0xff]
        %v933 = vpack.c.bf16 %v932, %v931
        %v934 = vld [vmem:[%s817] sm:$0xf]
        %v935 = vld [vmem:[%s817 + $0x4] sm:$0xf]
        %v936 = vld [vmem:[%s817 + $0x8] sm:$0xf]
        %v937 = vld [vmem:[%s817 + $0xc] sm:$0xf]
        %v942 = vunpack.c.l.b16 %v934
        %v943 = vunpack.c.l.b16 %v935
        %v944 = vunpack.c.l.b16 %v936
        %v945 = vunpack.c.l.b16 %v937
        %v946 = vpack.c.b16 %v943, %v942
        %v947 = vpack.c.b16 %v945, %v944
        %vm950 = vcmask 261120
        %v952 = vsel %vm950, %v933, 0
        %954 = vmatpush.bf16.msra.mxu0 0
        %955 = vmatpush.bf16.msra.mxu0 0
        %956 = vmatpush.bf16.msra.mxu0 0
        %957 = vmatpush.bf16.msra.mxu0 0
        %958 = vmatpush.bf16.msra.mxu0 0
        %959 = vmatpush.bf16.msra.mxu0 0
        %960 = vmatpush.bf16.msra.mxu0 %v947
        %961 = vmatpush.bf16.msra.mxu0 %v946
        %962 = vmatmul.bf16.gmra.mxu0 %v952
        %v963 = vpop.f32.mrf.mxu0
        %v964 = vadd.f32 0.0, %v963
        %v965 = vpop.f32.mrf.mxu0
        %v966 = vadd.f32 0.0, %v965
        %967 = vdwg.mxu0
        %v968 = vld [vmem:[%s822] sm:$0xf]
        %v969 = vld [vmem:[%s822 + $0x4] sm:$0xf]
        %v970 = vld [vmem:[%s822 + $0x8] sm:$0xf]
        %v971 = vld [vmem:[%s822 + $0xc] sm:$0xf]
        %v976 = vunpack.c.l.b16 %v968
        %v977 = vunpack.c.l.b16 %v969
        %v978 = vunpack.c.l.b16 %v970
        %v979 = vunpack.c.l.b16 %v971
        %v980 = vpack.c.b16 %v977, %v976
        %v981 = vpack.c.b16 %v979, %v978
        %984 = vmatpush.bf16.msra.mxu0 0
        %985 = vmatpush.bf16.msra.mxu0 0
        %986 = vmatpush.bf16.msra.mxu0 0
        %987 = vmatpush.bf16.msra.mxu0 0
        %988 = vmatpush.bf16.msra.mxu0 0
        %989 = vmatpush.bf16.msra.mxu0 0
        %990 = vmatpush.bf16.msra.mxu0 %v981
        %991 = vmatpush.bf16.msra.mxu0 %v980
        %992 = vmatmul.bf16.gmra.mxu0 %v952
        %v993 = vpop.f32.mrf.mxu0
        %v994 = vadd.f32 0.0, %v993
        %v995 = vpop.f32.mrf.mxu0
        %v996 = vadd.f32 0.0, %v995
        %997 = vdwg.mxu0
        %v998 = vld [vmem:[%s827] sm:$0xf]
        %v999 = vld [vmem:[%s827 + $0x4] sm:$0xf]
        %v1000 = vld [vmem:[%s827 + $0x8] sm:$0xf]
        %v1001 = vld [vmem:[%s827 + $0xc] sm:$0xf]
        %v1006 = vunpack.c.l.b16 %v998
        %v1007 = vunpack.c.l.b16 %v999
        %v1008 = vunpack.c.l.b16 %v1000
        %v1009 = vunpack.c.l.b16 %v1001
        %v1010 = vpack.c.b16 %v1007, %v1006
        %v1011 = vpack.c.b16 %v1009, %v1008
        %1014 = vmatpush.bf16.msra.mxu0 0
        %1015 = vmatpush.bf16.msra.mxu0 0
        %1016 = vmatpush.bf16.msra.mxu0 0
        %1017 = vmatpush.bf16.msra.mxu0 0
        %1018 = vmatpush.bf16.msra.mxu0 0
        %1019 = vmatpush.bf16.msra.mxu0 0
        %1020 = vmatpush.bf16.msra.mxu0 %v1011
        %1021 = vmatpush.bf16.msra.mxu0 %v1010
        %1022 = vmatmul.bf16.gmra.mxu0 %v952
        %v1023 = vpop.f32.mrf.mxu0
        %v1024 = vadd.f32 0.0, %v1023
        %v1025 = vpop.f32.mrf.mxu0
        %v1026 = vadd.f32 0.0, %v1025
        %1027 = vdwg.mxu0
        %v1028 = vpack.c.bf16 %v1024, %v1024
        %v1029 = vpack.c.bf16 %v1026, %v1026
        %v1030 = vld [vmem:[%s811] sm:$0x1]
        %vm1031 = vcmp.eq.s32.totalorder %v1030, 0
        %v1032 = vsel %vm1031, -1e+09, 0.0
        %v1034 = vperm.slane %v1032, 0
        %vm1036 = vcmask 130048
        %v1038 = vsel %vm1036, %v964, 0
        %v1041 = vsel %vm1036, %v994, 0
        %1043 = vmatpush.xpose.msra.mxu0 0.0
        %1044 = vmatpush.xpose.msra.mxu0 0.0
        %1045 = vmatpush.xpose.msra.mxu0 0.0
        %1046 = vmatpush.xpose.msra.mxu0 0.0
        %1047 = vmatpush.xpose.msra.mxu0 0.0
        %1048 = vmatpush.xpose.msra.mxu0 0.0
        %1049 = vmatpush.xpose.msra.mxu0 0.0
        %1050 = vmatpush.xpose.msra.mxu0 0.0
        %1051 = vmatpush.xpose.msra.mxu0 0.0
        %1052 = vmatpush.xpose.msra.mxu0 0.0
        %1053 = vmatpush.xpose.msra.mxu0 0.0
        %1054 = vmatpush.xpose.msra.mxu0 0.0
        %1055 = vmatpush.xpose.msra.mxu0 0.0
        %1056 = vmatpush.xpose.msra.mxu0 0.0
        %1057 = vmatpush.xpose.msra.mxu0 0.0
        %1058 = vmatpush.xpose.msra.mxu0 %v1041
        %1059 = vmatmul.f32.gmra.mxu0 %v1038
        %v1060 = vpop.f32.mrf.mxu0
        %v1061 = vadd.f32 %v1034, %v1060
        %1062 = vdwg.mxu0
        %vm1063 = vcmask 64512
        %v1064 = vsel %vm1063, %v1061, -inf
        %1065 = vmax.xlane.f32.xlu0 %v1064
        %v1066 = vpop.xlane.xlu0 %1065
        %v1067 = vsub.f32 %v1061, %v1066
        %v1068 = vmul.f32 %v1067, 1.442695
        %v1069 = vpow.pop %v1068
        %v1070 = vsel %vm1063, %v1069, 0.0
        %1071 = vadd.xlane.f32.xlu0 %v1070
        %v1072 = vpop.xlane.xlu0 %1071
        %v1073 = vrcp.pop %v1072
        %v1074 = vmul.f32 %v1069, %v1073
        %v1075 = vpack.c.bf16 %v1074, %v1074
        %v1077 = vsel %vm1063, %v1075, 0
        %vm1079 = vcmask 1043456
        %v1081 = vsel %vm1079, %v1028, 0
        %1083 = vmatpush.bf16.msra.mxu0 0
        %1084 = vmatpush.bf16.msra.mxu0 0
        %1085 = vmatpush.bf16.msra.mxu0 0
        %1086 = vmatpush.bf16.msra.mxu0 0
        %1087 = vmatpush.bf16.msra.mxu0 0
        %1088 = vmatpush.bf16.msra.mxu0 0
        %1089 = vmatpush.bf16.msra.mxu0 0
        %1090 = vmatpush.bf16.msra.mxu0 %v1081
        %1091 = vmatmul.bf16.gmra.mxu0 %v1077
        %v1092 = vpop.f32.mrf.mxu0
        %v1093 = vadd.f32 0.0, %v1092
        %v1094 = vpop.f32.mrf.mxu0
        %1095 = vdwg.mxu0
        %1096 = vrot.lane.b32.xlu0 %v964, 112
        %v1097 = vpop.permute.xlu0 %1096
        %1098 = vrot.lane.b32.xlu0 %v994, 112
        %v1099 = vpop.permute.xlu0 %1098
        %v1100 = vsel %vm1036, %v1097, 0
        %v1102 = vsel %vm1036, %v1099, 0
        %1104 = vmatpush.xpose.msra.mxu0 0.0
        %1105 = vmatpush.xpose.msra.mxu0 0.0
        %1106 = vmatpush.xpose.msra.mxu0 0.0
        %1107 = vmatpush.xpose.msra.mxu0 0.0
        %1108 = vmatpush.xpose.msra.mxu0 0.0
        %1109 = vmatpush.xpose.msra.mxu0 0.0
        %1110 = vmatpush.xpose.msra.mxu0 0.0
        %1111 = vmatpush.xpose.msra.mxu0 0.0
        %1112 = vmatpush.xpose.msra.mxu0 0.0
        %1113 = vmatpush.xpose.msra.mxu0 0.0
        %1114 = vmatpush.xpose.msra.mxu0 0.0
        %1115 = vmatpush.xpose.msra.mxu0 0.0
        %1116 = vmatpush.xpose.msra.mxu0 0.0
        %1117 = vmatpush.xpose.msra.mxu0 0.0
        %1118 = vmatpush.xpose.msra.mxu0 0.0
        %1119 = vmatpush.xpose.msra.mxu0 %v1102
        %1120 = vmatmul.f32.gmra.mxu0 %v1100
        %v1121 = vpop.f32.mrf.mxu0
        %v1122 = vadd.f32 %v1034, %v1121
        %1123 = vdwg.mxu0
        %v1124 = vsel %vm1063, %v1122, -inf
        %1125 = vmax.xlane.f32.xlu0 %v1124
        %v1126 = vpop.xlane.xlu0 %1125
        %v1127 = vsub.f32 %v1122, %v1126
        %v1128 = vmul.f32 %v1127, 1.442695
        %v1129 = vpow.pop %v1128
        %v1130 = vsel %vm1063, %v1129, 0.0
        %1131 = vadd.xlane.f32.xlu0 %v1130
        %v1132 = vpop.xlane.xlu0 %1131
        %v1133 = vrcp.pop %v1132
        %v1134 = vmul.f32 %v1129, %v1133
        %v1135 = vpack.c.bf16 %v1134, %v1134
        %v1137 = vunpack.c.l.b16 %v1028
        %v1138 = vpack.c.b16 %v1137, %v1137
        %1139 = vrot.lane.b32.xlu0 %v1138, 112
        %v1140 = vpop.permute.xlu0 %1139
        %v1142 = vsel %vm1063, %v1135, 0
        %v1145 = vsel %vm1079, %v1140, 0
        %1147 = vmatpush.bf16.msra.mxu0 0
        %1148 = vmatpush.bf16.msra.mxu0 0
        %1149 = vmatpush.bf16.msra.mxu0 0
        %1150 = vmatpush.bf16.msra.mxu0 0
        %1151 = vmatpush.bf16.msra.mxu0 0
        %1152 = vmatpush.bf16.msra.mxu0 0
        %1153 = vmatpush.bf16.msra.mxu0 0
        %1154 = vmatpush.bf16.msra.mxu0 %v1145
        %1155 = vmatmul.bf16.gmra.mxu0 %v1142
        %v1156 = vpop.f32.mrf.mxu0
        %v1157 = vadd.f32 0.0, %v1156
        %v1158 = vpop.f32.mrf.mxu0
        %1159 = vdwg.mxu0
        %1161 = vrot.lane.b32.xlu0 %v1157, 16
        %v1162 = vpop.permute.xlu0 %1161
        %v1164 = vsel %vm1036, %v1093, %v1162
        %s1165 = scalar_lea.vmem %s811, 1
        %v1166 = vld [vmem:[%s1165] sm:$0x1]
        %vm1167 = vcmp.eq.s32.totalorder %v1166, 0
        %v1168 = vsel %vm1167, -1e+09, 0.0
        %v1170 = vperm.slane %v1168, 0
        %v1173 = vsel %vm1036, %v966, 0
        %v1176 = vsel %vm1036, %v996, 0
        %1178 = vmatpush.xpose.msra.mxu0 0.0
        %1179 = vmatpush.xpose.msra.mxu0 0.0
        %1180 = vmatpush.xpose.msra.mxu0 0.0
        %1181 = vmatpush.xpose.msra.mxu0 0.0
        %1182 = vmatpush.xpose.msra.mxu0 0.0
        %1183 = vmatpush.xpose.msra.mxu0 0.0
        %1184 = vmatpush.xpose.msra.mxu0 0.0
        %1185 = vmatpush.xpose.msra.mxu0 0.0
        %1186 = vmatpush.xpose.msra.mxu0 0.0
        %1187 = vmatpush.xpose.msra.mxu0 0.0
        %1188 = vmatpush.xpose.msra.mxu0 0.0
        %1189 = vmatpush.xpose.msra.mxu0 0.0
        %1190 = vmatpush.xpose.msra.mxu0 0.0
        %1191 = vmatpush.xpose.msra.mxu0 0.0
        %1192 = vmatpush.xpose.msra.mxu0 0.0
        %1193 = vmatpush.xpose.msra.mxu0 %v1176
        %1194 = vmatmul.f32.gmra.mxu0 %v1173
        %v1195 = vpop.f32.mrf.mxu0
        %v1196 = vadd.f32 %v1170, %v1195
        %1197 = vdwg.mxu0
        %v1198 = vsel %vm1063, %v1196, -inf
        %1199 = vmax.xlane.f32.xlu0 %v1198
        %v1200 = vpop.xlane.xlu0 %1199
        %v1201 = vsub.f32 %v1196, %v1200
        %v1202 = vmul.f32 %v1201, 1.442695
        %v1203 = vpow.pop %v1202
        %v1204 = vsel %vm1063, %v1203, 0.0
        %1205 = vadd.xlane.f32.xlu0 %v1204
        %v1206 = vpop.xlane.xlu0 %1205
        %v1207 = vrcp.pop %v1206
        %v1208 = vmul.f32 %v1203, %v1207
        %v1209 = vpack.c.bf16 %v1208, %v1208
        %v1211 = vsel %vm1063, %v1209, 0
        %v1214 = vsel %vm1079, %v1029, 0
        %1216 = vmatpush.bf16.msra.mxu0 0
        %1217 = vmatpush.bf16.msra.mxu0 0
        %1218 = vmatpush.bf16.msra.mxu0 0
        %1219 = vmatpush.bf16.msra.mxu0 0
        %1220 = vmatpush.bf16.msra.mxu0 0
        %1221 = vmatpush.bf16.msra.mxu0 0
        %1222 = vmatpush.bf16.msra.mxu0 0
        %1223 = vmatpush.bf16.msra.mxu0 %v1214
        %1224 = vmatmul.bf16.gmra.mxu0 %v1211
        %v1225 = vpop.f32.mrf.mxu0
        %v1226 = vadd.f32 0.0, %v1225
        %v1227 = vpop.f32.mrf.mxu0
        %1228 = vdwg.mxu0
        %1229 = vrot.lane.b32.xlu0 %v966, 112
        %v1230 = vpop.permute.xlu0 %1229
        %1231 = vrot.lane.b32.xlu0 %v996, 112
        %v1232 = vpop.permute.xlu0 %1231
        %v1233 = vsel %vm1036, %v1230, 0
        %v1235 = vsel %vm1036, %v1232, 0
        %1237 = vmatpush.xpose.msra.mxu0 0.0
        %1238 = vmatpush.xpose.msra.mxu0 0.0
        %1239 = vmatpush.xpose.msra.mxu0 0.0
        %1240 = vmatpush.xpose.msra.mxu0 0.0
        %1241 = vmatpush.xpose.msra.mxu0 0.0
        %1242 = vmatpush.xpose.msra.mxu0 0.0
        %1243 = vmatpush.xpose.msra.mxu0 0.0
        %1244 = vmatpush.xpose.msra.mxu0 0.0
        %1245 = vmatpush.xpose.msra.mxu0 0.0
        %1246 = vmatpush.xpose.msra.mxu0 0.0
        %1247 = vmatpush.xpose.msra.mxu0 0.0
        %1248 = vmatpush.xpose.msra.mxu0 0.0
        %1249 = vmatpush.xpose.msra.mxu0 0.0
        %1250 = vmatpush.xpose.msra.mxu0 0.0
        %1251 = vmatpush.xpose.msra.mxu0 0.0
        %1252 = vmatpush.xpose.msra.mxu0 %v1235
        %1253 = vmatmul.f32.gmra.mxu0 %v1233
        %v1254 = vpop.f32.mrf.mxu0
        %v1255 = vadd.f32 %v1170, %v1254
        %1256 = vdwg.mxu0
        %v1257 = vsel %vm1063, %v1255, -inf
        %1258 = vmax.xlane.f32.xlu0 %v1257
        %v1259 = vpop.xlane.xlu0 %1258
        %v1260 = vsub.f32 %v1255, %v1259
        %v1261 = vmul.f32 %v1260, 1.442695
        %v1262 = vpow.pop %v1261
        %v1263 = vsel %vm1063, %v1262, 0.0
        %1264 = vadd.xlane.f32.xlu0 %v1263
        %v1265 = vpop.xlane.xlu0 %1264
        %v1266 = vrcp.pop %v1265
        %v1267 = vmul.f32 %v1262, %v1266
        %v1268 = vpack.c.bf16 %v1267, %v1267
        %v1270 = vunpack.c.l.b16 %v1029
        %v1271 = vpack.c.b16 %v1270, %v1270
        %1272 = vrot.lane.b32.xlu0 %v1271, 112
        %v1273 = vpop.permute.xlu0 %1272
        %v1275 = vsel %vm1063, %v1268, 0
        %v1278 = vsel %vm1079, %v1273, 0
        %1280 = vmatpush.bf16.msra.mxu0 0
        %1281 = vmatpush.bf16.msra.mxu0 0
        %1282 = vmatpush.bf16.msra.mxu0 0
        %1283 = vmatpush.bf16.msra.mxu0 0
        %1284 = vmatpush.bf16.msra.mxu0 0
        %1285 = vmatpush.bf16.msra.mxu0 0
        %1286 = vmatpush.bf16.msra.mxu0 0
        %1287 = vmatpush.bf16.msra.mxu0 %v1278
        %1288 = vmatmul.bf16.gmra.mxu0 %v1275
        %v1289 = vpop.f32.mrf.mxu0
        %v1290 = vadd.f32 0.0, %v1289
        %v1291 = vpop.f32.mrf.mxu0
        %1292 = vdwg.mxu0
        %1294 = vrot.lane.b32.xlu0 %v1290, 16
        %v1295 = vpop.permute.xlu0 %1294
        %v1297 = vsel %vm1036, %v1226, %v1295
        %v1298 = vpack.c.bf16 %v1297, %v1164
        %v1299 = vld [vmem:[%s703] sm:$0xf]
        %v1300 = vld [vmem:[%s703 + $0x4] sm:$0xf]
        %v1301 = vld [vmem:[%s703 + $0x8] sm:$0xf]
        %v1302 = vld [vmem:[%s703 + $0xc] sm:$0xf]
        %v1307 = vunpack.c.l.b16 %v1299
        %v1308 = vunpack.c.l.b16 %v1300
        %v1309 = vunpack.c.l.b16 %v1301
        %v1310 = vunpack.c.l.b16 %v1302
        %v1311 = vpack.c.b16 %v1308, %v1307
        %v1312 = vpack.c.b16 %v1310, %v1309
        %v1316 = vsel %vm950, %v1298, 0
        %1318 = vmatpush.bf16.msra.mxu0 0
        %1319 = vmatpush.bf16.msra.mxu0 0
        %1320 = vmatpush.bf16.msra.mxu0 0
        %1321 = vmatpush.bf16.msra.mxu0 0
        %1322 = vmatpush.bf16.msra.mxu0 0
        %1323 = vmatpush.bf16.msra.mxu0 0
        %1324 = vmatpush.bf16.msra.mxu0 %v1312
        %1325 = vmatpush.bf16.msra.mxu0 %v1311
        %1326 = vmatmul.bf16.gmra.mxu0 %v1316
        %v1327 = vpop.f32.mrf.mxu0
        %v1328 = vadd.f32 %v931, %v1327
        %v1329 = vpop.f32.mrf.mxu0
        %v1330 = vadd.f32 %v932, %v1329
        %1331 = vdwg.mxu0
        %v1332 = vld [vmem:[%s841] sm:$0x1]
        %v1333 = vld [vmem:[%s844] sm:$0x1]
        %v1334 = vsel %vm950, %v1328, 0.0
        %1335 = vadd.xlane.f32.xlu0 %v1334
        %v1336 = vpop.xlane.xlu0 %1335
        %v1337 = vsel %vm950, %v1330, 0.0
        %1338 = vadd.xlane.f32.xlu0 %v1337
        %v1339 = vpop.xlane.xlu0 %1338
        %v1340 = vrcp.pop 32.0
        %v1341 = vmul.f32 32.0, %v1340
        %v1342 = vsub.f32 1.0, %v1341
        %v1343 = vmul.f32 %v1340, %v1342
        %v1344 = vadd.f32 %v1340, %v1343
        %vm1345 = vweird.f32 %v1340
        %v1346 = vsel %vm1345, %v1340, %v1344
        %v1347 = vmul.f32 %v1336, %v1346
        %v1348 = vmul.f32 %v1339, %v1346
        %v1349 = vsub.f32 %v1328, %v1347
        %v1350 = vsub.f32 %v1330, %v1348
        %v1351 = vmul.f32 %v1349, %v1349
        %v1352 = vmul.f32 %v1350, %v1350
        %v1353 = vsel %vm950, %v1351, 0.0
        %1354 = vadd.xlane.f32.xlu0 %v1353
        %v1355 = vpop.xlane.xlu0 %1354
        %v1356 = vsel %vm950, %v1352, 0.0
        %1357 = vadd.xlane.f32.xlu0 %v1356
        %v1358 = vpop.xlane.xlu0 %1357
        %v1359 = vmul.f32 %v1355, %v1346
        %v1360 = vmul.f32 %v1358, %v1346
        %v1361 = vadd.f32 %v1359, 1e-06
        %v1362 = vadd.f32 %v1360, 1e-06
        %v1363 = vrsqrt.pop %v1361
        %v1364 = vmul.f32 %v1363, %v1361
        %v1365 = vmul.f32 %v1364, %v1363
        %v1366 = vmul.f32 0.5, %v1365
        %v1367 = vsub.f32 1.5, %v1366
        %v1368 = vmul.f32 %v1363, %v1367
        %vm1369 = vweird.f32 %v1361
        %vm1370 = vweird.f32 %v1363
        %vm1371 = vmor %vm1369, %vm1370
        %v1372 = vsel %vm1371, %v1363, %v1368
        %v1373 = vrsqrt.pop %v1362
        %v1374 = vmul.f32 %v1373, %v1362
        %v1375 = vmul.f32 %v1374, %v1373
        %v1376 = vmul.f32 0.5, %v1375
        %v1377 = vsub.f32 1.5, %v1376
        %v1378 = vmul.f32 %v1373, %v1377
        %vm1379 = vweird.f32 %v1362
        %vm1380 = vweird.f32 %v1373
        %vm1381 = vmor %vm1379, %vm1380
        %v1382 = vsel %vm1381, %v1373, %v1378
        %v1383 = vmul.f32 %v1349, %v1372
        %v1384 = vmul.f32 %v1350, %v1382
        %v1386 = vperm.slane %v1332, 0
        %v1388 = vmul.f32 %v1383, %v1386
        %v1389 = vmul.f32 %v1384, %v1386
        %v1391 = vperm.slane %v1333, 0
        %v1393 = vadd.f32 %v1388, %v1391
        %v1394 = vadd.f32 %v1389, %v1391
        %v1395 = vpack.c.bf16 %v1394, %v1393
        %v1396 = vld [vmem:[%s713] sm:$0xf]
        %v1397 = vld [vmem:[%s713 + $0x4] sm:$0xf]
        %v1398 = vld [vmem:[%s713 + $0x8] sm:$0xf]
        %v1399 = vld [vmem:[%s713 + $0xc] sm:$0xf]
        %v1400 = vld [vmem:[%s830] sm:$0x1]
        %v1402 = vperm.slane %v1400, 0
        %v1408 = vunpack.c.l.b16 %v1396
        %v1409 = vunpack.c.l.b16 %v1397
        %v1410 = vunpack.c.l.b16 %v1398
        %v1411 = vunpack.c.l.b16 %v1399
        %v1412 = vpack.c.b16 %v1409, %v1408
        %v1413 = vpack.c.b16 %v1411, %v1410
        %v1417 = vsel %vm950, %v1395, 0
        %1419 = vmatpush.bf16.msra.mxu0 0
        %1420 = vmatpush.bf16.msra.mxu0 0
        %1421 = vmatpush.bf16.msra.mxu0 0
        %1422 = vmatpush.bf16.msra.mxu0 0
        %1423 = vmatpush.bf16.msra.mxu0 0
        %1424 = vmatpush.bf16.msra.mxu0 0
        %1425 = vmatpush.bf16.msra.mxu0 %v1413
        %1426 = vmatpush.bf16.msra.mxu0 %v1412
        %1427 = vmatmul.bf16.gmra.mxu0 %v1417
        %v1428 = vpop.f32.mrf.mxu0
        %v1429 = vadd.f32 %v1402, %v1428
        %v1430 = vpop.f32.mrf.mxu0
        %v1431 = vadd.f32 %v1402, %v1430
        %1432 = vdwg.mxu0
        %v1433 = vmax.f32 %v1429, 0.0
        %v1434 = vmax.f32 %v1431, 0.0
        %v1435 = vpack.c.bf16 %v1434, %v1433
        %v1436 = vld [vmem:[%s835] sm:$0xf]
        %v1437 = vld [vmem:[%s835 + $0x4] sm:$0xf]
        %v1438 = vld [vmem:[%s835 + $0x8] sm:$0xf]
        %v1439 = vld [vmem:[%s835 + $0xc] sm:$0xf]
        %v1440 = vld [vmem:[%s835 + $0x10] sm:$0xf]
        %v1441 = vld [vmem:[%s835 + $0x14] sm:$0xf]
        %v1442 = vld [vmem:[%s835 + $0x18] sm:$0xf]
        %v1443 = vld [vmem:[%s835 + $0x1c] sm:$0xf]
        %v1444 = vld [vmem:[%s838] sm:$0x1]
        %v1446 = vperm.slane %v1444, 0
        %v1456 = vunpack.c.l.b16 %v1436
        %v1457 = vunpack.c.l.b16 %v1437
        %v1458 = vunpack.c.l.b16 %v1438
        %v1459 = vunpack.c.l.b16 %v1439
        %v1460 = vunpack.c.l.b16 %v1440
        %v1461 = vunpack.c.l.b16 %v1441
        %v1462 = vunpack.c.l.b16 %v1442
        %v1463 = vunpack.c.l.b16 %v1443
        %v1464 = vpack.c.b16 %v1457, %v1456
        %v1465 = vpack.c.b16 %v1459, %v1458
        %v1466 = vpack.c.b16 %v1461, %v1460
        %v1467 = vpack.c.b16 %v1463, %v1462
        %vm1472 = vcmask 523264
        %v1474 = vsel %vm1472, %v1435, 0
        %1476 = vmatpush.bf16.msra.mxu0 0
        %1477 = vmatpush.bf16.msra.mxu0 0
        %1478 = vmatpush.bf16.msra.mxu0 0
        %1479 = vmatpush.bf16.msra.mxu0 0
        %1480 = vmatpush.bf16.msra.mxu0 %v1467
        %1481 = vmatpush.bf16.msra.mxu0 %v1466
        %1482 = vmatpush.bf16.msra.mxu0 %v1465
        %1483 = vmatpush.bf16.msra.mxu0 %v1464
        %1484 = vmatmul.bf16.gmra.mxu0 %v1474
        %v1485 = vpop.f32.mrf.mxu0
        %v1486 = vadd.f32 %v1446, %v1485
        %v1487 = vpop.f32.mrf.mxu0
        %v1488 = vadd.f32 %v1446, %v1487
        %1489 = vdwg.mxu0
        %v1490 = vadd.f32 %v1486, %v1393
        %v1491 = vadd.f32 %v1488, %v1394
        %v1492 = vld [vmem:[%s847] sm:$0x1]
        %v1493 = vld [vmem:[%s850] sm:$0x1]
        %v1494 = vsel %vm950, %v1490, 0.0
        %1495 = vadd.xlane.f32.xlu0 %v1494
        %v1496 = vpop.xlane.xlu0 %1495
        %v1497 = vsel %vm950, %v1491, 0.0
        %1498 = vadd.xlane.f32.xlu0 %v1497
        %v1499 = vpop.xlane.xlu0 %1498
        %v1500 = vmul.f32 %v1496, %v1346
        %v1501 = vmul.f32 %v1499, %v1346
        %v1502 = vsub.f32 %v1490, %v1500
        %v1503 = vsub.f32 %v1491, %v1501
        %v1504 = vmul.f32 %v1502, %v1502
        %v1505 = vmul.f32 %v1503, %v1503
        %v1506 = vsel %vm950, %v1504, 0.0
        %1507 = vadd.xlane.f32.xlu0 %v1506
        %v1508 = vpop.xlane.xlu0 %1507
        %v1509 = vsel %vm950, %v1505, 0.0
        %1510 = vadd.xlane.f32.xlu0 %v1509
        %v1511 = vpop.xlane.xlu0 %1510
        %v1512 = vmul.f32 %v1508, %v1346
        %v1513 = vmul.f32 %v1511, %v1346
        %v1514 = vadd.f32 %v1512, 1e-06
        %v1515 = vadd.f32 %v1513, 1e-06
        %v1516 = vrsqrt.pop %v1514
        %v1517 = vmul.f32 %v1516, %v1514
        %v1518 = vmul.f32 %v1517, %v1516
        %v1519 = vmul.f32 0.5, %v1518
        %v1520 = vsub.f32 1.5, %v1519
        %v1521 = vmul.f32 %v1516, %v1520
        %vm1522 = vweird.f32 %v1514
        %vm1523 = vweird.f32 %v1516
        %vm1524 = vmor %vm1522, %vm1523
        %v1525 = vsel %vm1524, %v1516, %v1521
        %v1526 = vrsqrt.pop %v1515
        %v1527 = vmul.f32 %v1526, %v1515
        %v1528 = vmul.f32 %v1527, %v1526
        %v1529 = vmul.f32 0.5, %v1528
        %v1530 = vsub.f32 1.5, %v1529
        %v1531 = vmul.f32 %v1526, %v1530
        %vm1532 = vweird.f32 %v1515
        %vm1533 = vweird.f32 %v1526
        %vm1534 = vmor %vm1532, %vm1533
        %v1535 = vsel %vm1534, %v1526, %v1531
        %v1536 = vmul.f32 %v1502, %v1525
        %v1537 = vmul.f32 %v1503, %v1535
        %v1539 = vperm.slane %v1492, 0
        %v1541 = vmul.f32 %v1536, %v1539
        %v1542 = vmul.f32 %v1537, %v1539
        %v1544 = vperm.slane %v1493, 0
        %v1546 = vadd.f32 %v1541, %v1544
        %v1547 = vadd.f32 %v1542, %v1544
        %p1548 = scmp.lt.s32.totalorder %s39, 1
        // Predicated region
        $region113: #{tpu_custom_call.1} parent=87 // pred_check
          %p1549 = pneg %p1548
        $region114: #{tpu_custom_call.1} parent=87 // pred_check_branch
          %1551 = sbr.rel (%p1549) target = $region116
        $region115: #{tpu_custom_call.1} parent=87 // pred_region
          %1552 = vst.msk [vmem:[#allocation2] sm:$0xff] %vm950, %v1546
          %1553 = vst.msk [vmem:[#allocation2 + $0x8] sm:$0xff] %vm950, %v1547
        $region116: #{tpu_custom_call.1} parent=87 // pred_fallthru
          _
        %p1554 = scmp.eq.s32.totalorder %s39, 1
        // Predicated region
        $region117: #{tpu_custom_call.1} parent=87 // pred_check
          %p1555 = pneg %p1554
        $region118: #{tpu_custom_call.1} parent=87 // pred_check_branch
          %1557 = sbr.rel (%p1555) target = $region120
        $region119: #{tpu_custom_call.1} parent=87 // pred_region
          %1558 = vst.msk [vmem:[#allocation12] sm:$0xff] %vm950, %v1546
          %s1559 = scalar_lea.vmem [#allocation12], 8
          %1560 = vst.msk [vmem:[%s1559] sm:$0xff] %vm950, %v1547
        $region120: #{tpu_custom_call.1} parent=87 // pred_fallthru
          _
        // Predicated region
        $region121: #{tpu_custom_call.1} parent=87 // pred_check
          %p1561 = pneg %p491
        $region122: #{tpu_custom_call.1} parent=87 // pred_check_branch
          %1563 = sbr.rel (%p1561) target = $region124
        $region123: #{tpu_custom_call.1} parent=87 // pred_region
          %s1564 = smul.u32 2, %s38
          %1566 = vsyncadd [#allocation5], 0
          %s1567 = smul.addr %s1564, 8
          %s1568 = scalar_lea.hbm %s17, %s1567
          %s1569 = sshll.u32 [#allocation12], 4
          %s1570 = int_to_ptr.vmem [resolvable:$true] %s1569
          %s1571 = sshll.u32 %s1568, 4
          %s1572 = int_to_ptr.hbm [resolvable:$true] %s1571
          %1577 = dma.vmem_to_hbm [thread:$0]  %s1570, 256, %s1572, [#allocation5], 128, 128, 8
        $region124: #{tpu_custom_call.1} parent=87 // pred_fallthru
          _
        // Predicated region
        $region125: #{tpu_custom_call.1} parent=87 // pred_check
          %p1578 = pneg %p491
        $region126: #{tpu_custom_call.1} parent=87 // pred_check_branch
          %1580 = sbr.rel (%p1578) target = $region128
        $region127: #{tpu_custom_call.1} parent=87 // pred_region
          %1582 = dma.done [#allocation5], 256
        $region128: #{tpu_custom_call.1} parent=87 // pred_fallthru
          _
      $region88: #{tpu_custom_call.1} parent=5 // pred_fallthru
        _
      %p1583 = scmp.le.s32.totalorder 2, %s29
      // Predicated region
      $region129: #{tpu_custom_call.1} parent=5 // pred_check
        %p1584 = pneg %p1583
      $region130: #{tpu_custom_call.1} parent=5 // pred_check_branch
        %1586 = sbr.rel (%p1584) target = $region132
      $region131: #{tpu_custom_call.1} parent=5 // pred_region
        %s1587 = ssub.s32 %s29, 2
      $region132: #{tpu_custom_call.1} parent=5 // pred_fallthru
        _
    $region6: #{tpu_custom_call.1} parent=1 // loop_footer
      %s33 = sadd.s32 1, %s29
    $region7: #{tpu_custom_call.1} parent=1 // loop_footer_branch
      %28 = sbr.rel target = $region3
    $region8: #{tpu_custom_call.1} parent=1 // loop_exit
      _
    %1588 = vsyncpa [#allocation4], 1
    %s1589 = scalar_lea.sflag [#allocation4], 1
    %1590 = vsyncpa %s1589, 1
    %1591 = vsyncpa [#allocation7], 1
    %1592 = vsyncpa [#allocation10], 1
    %s1593 = scalar_lea.sflag [#allocation10], 1
    %1594 = vsyncpa %s1593, 1
    %1595 = vsyncpa [#allocation5], 1
    %s1596 = scalar_lea.sflag [#allocation5], 1
    %1597 = vsyncpa %s1596, 1

</llo_original>
